<compile_context>
chip_gen: v7x
topology: tpu7x:2x2x1
jax: 0.10.0
libtpu: 0.0.40
codegen_flags: <defaults>
</compile_context>

<pallas_src>
import functools

import jax
import jax.numpy as jnp
from jax import lax
from jax.experimental import pallas as pl
from jax.experimental.pallas import tpu as pltpu


# ----------------------------------------------------------------------------- kernels


def _layer1_kernel(x_ref, adj_ref, dinv_k_ref, dinv_i_ref, w1_ref, b1_ref,
                   bn_scale_ref, bn_shift_ref, h_ref, acc_ref):
    """fc1 -> normalized propagate -> BatchNorm(eval, folded affine) -> ReLU.

    Grid: (i = node-row tile [parallel], k = adj-column tile [arbitrary]).
    x_ref:      [tk, F_in]  column-tile node features
    adj_ref:    [tm, tk]    bf16 edge-count block (self-loops already = 1)
    dinv_k/i:   [tk, 1] / [tm, 1]  D^{-1/2}
    h_ref:      [tm, H]     output (resident across k; written at last k)
    acc_ref:    [tm, H]     f32 accumulator scratch
    """
    k = pl.program_id(1)

    @pl.when(k == 0)
    def _():
        acc_ref[...] = jnp.zeros_like(acc_ref)

    # fc1 on the column tile of nodes.  (Recomputed per row tile; negligible for
    # narrow inputs.  For very wide F_in, hoist fc1 into its own matmul.)
    pre = jnp.dot(x_ref[...], w1_ref[...],
                  preferred_element_type=jnp.float32) + b1_ref[...]
    # Right-side D^{-1/2} scaling, then bf16 so both MXU operands are bf16.
    pre = (dinv_k_ref[...] * pre).astype(jnp.bfloat16)
    acc_ref[...] += jnp.dot(adj_ref[...], pre, preferred_element_type=jnp.float32)

    @pl.when(k == pl.num_programs(1) - 1)
    def _():
        h = dinv_i_ref[...] * acc_ref[...]                       # left D^{-1/2}
        h = h * bn_scale_ref[...] + bn_shift_ref[...]            # BatchNorm (eval)
        # TODO(synk): nn.Dropout(p=0.2) is identity in eval mode; training-mode
        # dropout mask and batch-stat BatchNorm are not implemented.
        h_ref[...] = jnp.maximum(h, 0.0).astype(h_ref.dtype)     # ReLU


def _layer2_kernel(h_ref, adj_ref, dinv_k_ref, dinv_i_ref, w2_ref, b2_ref,
                   out_ref, acc_ref):
    """fc2 -> normalized propagate -> log_softmax (fused epilogue)."""
    k = pl.program_id(1)

    @pl.when(k == 0)
    def _():
        acc_ref[...] = jnp.zeros_like(acc_ref)

    pre = jnp.dot(h_ref[...], w2_ref[...],
                  preferred_element_type=jnp.float32) + b2_ref[...]
    pre = (dinv_k_ref[...] * pre).astype(jnp.bfloat16)
    acc_ref[...] += jnp.dot(adj_ref[...], pre, preferred_element_type=jnp.float32)

    @pl.when(k == pl.num_programs(1) - 1)
    def _():
        z = dinv_i_ref[...] * acc_ref[...]
        m = jnp.max(z, axis=1, keepdims=True)
        s = z - m
        lse = jnp.log(jnp.sum(jnp.exp(s), axis=1, keepdims=True))
        # Output last dim (num classes) < 128 lanes -> masked partial stores; low
        # priority at this size (see review); pad/stack classes if it ever matters.
        out_ref[...] = (s - lse).astype(out_ref.dtype)


# ----------------------------------------------------------------------------- wrapper


def _pick_tile(n, target, align):
    """Largest multiple of `align` that divides n and is <= target, else full n."""
    best = None
    t = align
    while t <= min(target, n):
        if n % t == 0:
            best = t
        t += align
    return best if best is not None else n


def build_graph(edge_index, *, num_nodes):
    """Dense normalized-GCN graph tensors.  Call ONCE and cache across forward calls.

    Returns:
      adj:  [N, N] bf16 edge counts with add_remaining_self_loops semantics
            (existing self-loops dropped, exactly one self-loop added per node).
            bf16 is exact for small integer multiplicities.
      dinv: [N, 1] f32, deg^{-1/2} with deg = in-degree (+1 self-loop), computed
            directly from the edge list so it stays exact.
    """
    src, dst = edge_index[0], edge_index[1]
    keep = (src != dst).astype(jnp.float32)
    adj = jnp.zeros((num_nodes, num_nodes), jnp.float32).at[dst, src].add(keep)
    adj = adj + jnp.eye(num_nodes, dtype=jnp.float32)

    deg = jnp.zeros((num_nodes,), jnp.float32).at[dst].add(keep) + 1.0
    dinv = lax.rsqrt(deg).reshape(num_nodes, 1)
    return adj.astype(jnp.bfloat16), dinv


def gcn_forward(params, x, adj, dinv, *, block_rows=256, block_cols=512, eps=1e-5):
    """Eval-mode forward of GCNWithNormAndDropout via two tiled Pallas calls."""
    n, f_in = x.shape
    hidden = params["w1"].shape[1]
    out_size = params["w2"].shape[1]

    # Fold eval-mode BatchNorm1d into a per-channel affine.
    bn_scale = params["bn_gamma"] * lax.rsqrt(params["bn_var"] + eps)
    bn_shift = params["bn_beta"] - params["bn_mean"] * bn_scale

    # Row tile (sublane axis, align 8) and adj-column tile (lane axis, align 128).
    # Defaults target large-N throughput; re-sweep per generation (v5e/v6e/v7x).
    tm = _pick_tile(n, block_rows, 8)
    tk = _pick_tile(n, block_cols, 128)
    grid = (n // tm, n // tk)

    cparams = pltpu.CompilerParams(
        dimension_semantics=("parallel", "arbitrary"),
        vmem_limit_bytes=48 * 1024 * 1024,   # explicit; leaves headroom on v7x (64 MiB)
    )

    # ---- call 1: fc1 + propagate + BN + ReLU -> h [N, H] -------------------------
    h = pl.pallas_call(
        _layer1_kernel,
        out_shape=jax.ShapeDtypeStruct((n, hidden), jnp.float32),
        grid_spec=pltpu.PrefetchScalarGridSpec(
            num_scalar_prefetch=0,
            grid=grid,
            in_specs=[
                pl.BlockSpec((tk, f_in), lambda i, k: (k, 0)),       # x  (col tile)
                pl.BlockSpec((tm, tk), lambda i, k: (i, k)),         # adj (bf16)
                pl.BlockSpec((tk, 1), lambda i, k: (k, 0)),          # dinv (cols)
                pl.BlockSpec((tm, 1), lambda i, k: (i, 0)),          # dinv (rows)
                pl.BlockSpec((f_in, hidden), lambda i, k: (0, 0)),   # w1
                pl.BlockSpec((1, hidden), lambda i, k: (0, 0)),      # b1
                pl.BlockSpec((1, hidden), lambda i, k: (0, 0)),      # bn_scale
                pl.BlockSpec((1, hidden), lambda i, k: (0, 0)),      # bn_shift
            ],
            out_specs=pl.BlockSpec((tm, hidden), lambda i, k: (i, 0)),
            scratch_shapes=[pltpu.VMEM((tm, hidden), jnp.float32)],
        ),
        compiler_params=cparams,
    )(x, adj, dinv, dinv, params["w1"], params["b1"], bn_scale, bn_shift)

    # ---- call 2: fc2 + propagate + log_softmax -> [N, O] --------------------------
    out = pl.pallas_call(
        _layer2_kernel,
        out_shape=jax.ShapeDtypeStruct((n, out_size), jnp.float32),
        grid_spec=pltpu.PrefetchScalarGridSpec(
            num_scalar_prefetch=0,
            grid=grid,
            in_specs=[
                pl.BlockSpec((tk, hidden), lambda i, k: (k, 0)),     # h  (col tile)
                pl.BlockSpec((tm, tk), lambda i, k: (i, k)),         # adj (bf16)
                pl.BlockSpec((tk, 1), lambda i, k: (k, 0)),          # dinv (cols)
                pl.BlockSpec((tm, 1), lambda i, k: (i, 0)),          # dinv (rows)
                pl.BlockSpec((hidden, out_size), lambda i, k: (0, 0)),  # w2
                pl.BlockSpec((1, out_size), lambda i, k: (0, 0)),       # b2
            ],
            out_specs=pl.BlockSpec((tm, out_size), lambda i, k: (i, 0)),
            scratch_shapes=[pltpu.VMEM((tm, out_size), jnp.float32)],
        ),
        compiler_params=cparams,
    )(h, adj, dinv, dinv, params["w2"], params["b2"])

    return out


# ----------------------------------------------------------------------------- reference


def _propagate_ref(x, src, dst, num_nodes):
    # Edge-wise reference mirroring the PyTorch `propagate` exactly.
    keep = (src != dst).astype(x.dtype)                  # dropped self-loops get weight 0
    loop = jnp.arange(num_nodes, dtype=src.dtype)
    row = jnp.concatenate([src, loop])
    col = jnp.concatenate([dst, loop])
    ew_keep = jnp.concatenate([keep, jnp.ones((num_nodes,), x.dtype)])
    deg = jnp.zeros((num_nodes,), x.dtype).at[col].add(ew_keep)
    dinv = deg ** -0.5
    ew = dinv[col] * dinv[row] * ew_keep
    out = ew[:, None] * x[row]
    return jnp.zeros_like(x).at[col].add(out)


def gcn_reference(params, x, edge_index, *, num_nodes, eps=1e-5):
    src, dst = edge_index[0], edge_index[1]
    h = x @ params["w1"] + params["b1"]
    h = _propagate_ref(h, src, dst, num_nodes)
    h = (h - params["bn_mean"]) / jnp.sqrt(params["bn_var"] + eps)
    h = h * params["bn_gamma"] + params["bn_beta"]
    h = jnp.maximum(h, 0.0)                               # ReLU; dropout = identity (eval)
    z = h @ params["w2"] + params["b2"]
    z = _propagate_ref(z, src, dst, num_nodes)
    return jax.nn.log_softmax(z, axis=1)


# ----------------------------------------------------------------------------- main


def init_params(key, input_size, hidden_size, output_size):
    ks = jax.random.split(key, 8)

    def uni(k, shape, fan_in):
        lim = 1.0 / (fan_in ** 0.5)
        return jax.random.uniform(k, shape, jnp.float32, -lim, lim)

    return {
        "w1": uni(ks[0], (input_size, hidden_size), input_size),
        "b1": uni(ks[1], (1, hidden_size), input_size),
        "w2": uni(ks[2], (hidden_size, output_size), hidden_size),
        "b2": uni(ks[3], (1, output_size), hidden_size),
        # non-trivial eval-mode BatchNorm stats so the BN path is exercised
        "bn_gamma": 1.0 + 0.1 * jax.random.normal(ks[4], (1, hidden_size), jnp.float32),
        "bn_beta": 0.1 * jax.random.normal(ks[5], (1, hidden_size), jnp.float32),
        "bn_mean": 0.1 * jax.random.normal(ks[6], (1, hidden_size), jnp.float32),
        "bn_var": jax.random.uniform(ks[7], (1, hidden_size), jnp.float32, 0.5, 1.5),
    }


if __name__ == "__main__":
    key = jax.random.PRNGKey(0)
    N, E = 256, 1024
    input_size, hidden_size, output_size = 16, 32, 8

    kx, ks, kd, kp = jax.random.split(key, 4)
    x = jax.random.normal(kx, (N, input_size), jnp.float32)
    src = jax.random.randint(ks, (E,), 0, N, dtype=jnp.int32)
    dst = jax.random.randint(kd, (E,), 0, N, dtype=jnp.int32)
    edge_index = jnp.stack([src, dst], axis=0)           # [2, E]

    params = init_params(kp, input_size, hidden_size, output_size)

    # Graph preprocessing is separated from the forward so the dense adjacency is
    # built once and cached, not re-scattered to HBM every call.
    adj, dinv = build_graph(edge_index, num_nodes=N)

    # Small tiles here so the (parallel, arbitrary) grid + accumulator path is
    # actually exercised at N=256 (grid = (4, 2)).  Production defaults: 256 / 512.
    fwd = jax.jit(functools.partial(gcn_forward, block_rows=64, block_cols=128))
    out = jax.block_until_ready(fwd(params, x, adj, dinv))

    ref = jax.block_until_ready(
        jax.jit(functools.partial(gcn_reference, num_nodes=N))(params, x, edge_index))

    assert out.shape == (N, output_size)
    assert bool(jnp.all(jnp.isfinite(out)))
    # rows of log_softmax must exp-sum to 1 (computed in f32 in the epilogue)
    assert bool(jnp.allclose(jnp.exp(out).sum(axis=1), 1.0, atol=1e-5))
    # match the pure-JAX f32 reference; tolerance relaxed from 1e-4 because the
    # propagate matmul operands are bf16 (adj exact, activations ~0.4% rel error).
    assert bool(jnp.allclose(out, ref, atol=3e-2, rtol=3e-2)), \
        f"max abs err {float(jnp.max(jnp.abs(out - ref)))}"
    print("KERNEL_OK")
</pallas_src>

<mosaic_0001>
module attributes {stable_mosaic.version = 11 : i64} {
  func.func @_layer1_kernel(%arg0: i32, %arg1: i32, %arg2: memref<128x16xf32, #tpu.memory_space<vmem>>, %arg3: memref<64x128xbf16, #tpu.memory_space<vmem>>, %arg4: memref<128x1xf32, #tpu.memory_space<vmem>>, %arg5: memref<64x1xf32, #tpu.memory_space<vmem>>, %arg6: memref<16x32xf32, #tpu.memory_space<vmem>>, %arg7: memref<1x32xf32, #tpu.memory_space<vmem>>, %arg8: memref<1x32xf32, #tpu.memory_space<vmem>>, %arg9: memref<1x32xf32, #tpu.memory_space<vmem>>, %arg10: memref<64x32xf32, #tpu.memory_space<vmem>>, %arg11: memref<64x32xf32, #tpu.memory_space<vmem>>) attributes {dimension_semantics = [#tpu.dimension_semantics<parallel>, #tpu.dimension_semantics<arbitrary>], iteration_bounds = array<i64: 4, 2>, scalar_prefetch = 0 : i64, scratch_operands = 1 : i64, tpu.core_type = #tpu.core_type<tc>, window_params = [{transform_indices = @transform_0, window_bounds = array<i64: 128, 16>}, {transform_indices = @transform_1, window_bounds = array<i64: 64, 128>}, {transform_indices = @transform_2, window_bounds = array<i64: 128, 1>}, {transform_indices = @transform_3, window_bounds = array<i64: 64, 1>}, {pipeline_mode = #tpu.pipeline_mode<synchronous>, transform_indices = @transform_4, window_bounds = array<i64: 16, 32>}, {pipeline_mode = #tpu.pipeline_mode<synchronous>, transform_indices = @transform_5, window_bounds = array<i64: 1, 32>}, {pipeline_mode = #tpu.pipeline_mode<synchronous>, transform_indices = @transform_6, window_bounds = array<i64: 1, 32>}, {pipeline_mode = #tpu.pipeline_mode<synchronous>, transform_indices = @transform_7, window_bounds = array<i64: 1, 32>}, {transform_indices = @transform_8, window_bounds = array<i64: 64, 32>}]} {
    %c0_i32 = arith.constant 0 : i32
    %0 = arith.cmpi eq, %arg1, %c0_i32 : i32
    %1 = arith.extui %0 : i1 to i32
    %c0_i32_0 = arith.constant 0 : i32
    %2 = arith.cmpi ne, %1, %c0_i32_0 : i32
    scf.if %2 {
      %cst_16 = arith.constant 0.000000e+00 : f32
      %21 = vector.broadcast %cst_16 : f32 to vector<64x32xf32>
      %c0_17 = arith.constant 0 : index
      %c0_18 = arith.constant 0 : index
      %22 = vector.load %arg11[%c0_17, %c0_18] : memref<64x32xf32, #tpu.memory_space<vmem>>, vector<64x32xf32>
      tpu.vector_store %arg11[%c0_17, %c0_18], %21 {strides = array<i32>} : memref<64x32xf32, #tpu.memory_space<vmem>>, vector<64x32xf32>,
    } else {
    }
    %c0 = arith.constant 0 : index
    %c0_1 = arith.constant 0 : index
    %3 = vector.load %arg2[%c0, %c0_1] : memref<128x16xf32, #tpu.memory_space<vmem>>, vector<128x16xf32>
    %c0_2 = arith.constant 0 : index
    %c0_3 = arith.constant 0 : index
    %4 = vector.load %arg6[%c0_2, %c0_3] : memref<16x32xf32, #tpu.memory_space<vmem>>, vector<16x32xf32>
    %cst = arith.constant dense<0.000000e+00> : vector<128x32xf32>
    %5 = tpu.matmul %3, %4, %cst {dimension_numbers = #tpu.dot_dimension_numbers<[1], [0], [0], [1], [0, 0, 1, 1], [], []>} : vector<128x16xf32>, vector<16x32xf32>, vector<128x32xf32> -> vector<128x32xf32>
    %c0_4 = arith.constant 0 : index
    %c0_5 = arith.constant 0 : index
    %6 = vector.load %arg7[%c0_4, %c0_5] : memref<1x32xf32, #tpu.memory_space<vmem>>, vector<1x32xf32>
    %7 = vector.broadcast %6 : vector<1x32xf32> to vector<128x32xf32>
    %8 = arith.addf %5, %7 : vector<128x32xf32>
    %c0_6 = arith.constant 0 : index
    %c0_7 = arith.constant 0 : index
    %9 = vector.load %arg4[%c0_6, %c0_7] : memref<128x1xf32, #tpu.memory_space<vmem>>, vector<128x1xf32>
    %10 = vector.broadcast %9 : vector<128x1xf32> to vector<128x32xf32>
    %11 = arith.mulf %10, %8 : vector<128x32xf32>
    %12 = arith.truncf %11 : vector<128x32xf32> to vector<128x32xbf16>
    %c0_8 = arith.constant 0 : index
    %c0_9 = arith.constant 0 : index
    %13 = vector.load %arg11[%c0_8, %c0_9] : memref<64x32xf32, #tpu.memory_space<vmem>>, vector<64x32xf32>
    %c0_10 = arith.constant 0 : index
    %c0_11 = arith.constant 0 : index
    %14 = vector.load %arg3[%c0_10, %c0_11] : memref<64x128xbf16, #tpu.memory_space<vmem>>, vector<64x128xbf16>
    %cst_12 = arith.constant dense<0.000000e+00> : vector<64x32xf32>
    %15 = tpu.matmul %14, %12, %cst_12 {dimension_numbers = #tpu.dot_dimension_numbers<[1], [0], [0], [1], [0, 0, 1, 1], [], []>} : vector<64x128xbf16>, vector<128x32xbf16>, vector<64x32xf32> -> vector<64x32xf32>
    %16 = arith.addf %13, %15 : vector<64x32xf32>
    %c0_13 = arith.constant 0 : index
    %c0_14 = arith.constant 0 : index
    %17 = vector.load %arg11[%c0_13, %c0_14] : memref<64x32xf32, #tpu.memory_space<vmem>>, vector<64x32xf32>
    tpu.vector_store %arg11[%c0_13, %c0_14], %16 {strides = array<i32>} : memref<64x32xf32, #tpu.memory_space<vmem>>, vector<64x32xf32>,
    %c1_i32 = arith.constant 1 : i32
    %18 = arith.cmpi eq, %arg1, %c1_i32 : i32
    %19 = arith.extui %18 : i1 to i32
    %c0_i32_15 = arith.constant 0 : i32
    %20 = arith.cmpi ne, %19, %c0_i32_15 : i32
    scf.if %20 {
      %c0_16 = arith.constant 0 : index
      %c0_17 = arith.constant 0 : index
      %21 = vector.load %arg5[%c0_16, %c0_17] : memref<64x1xf32, #tpu.memory_space<vmem>>, vector<64x1xf32>
      %c0_18 = arith.constant 0 : index
      %c0_19 = arith.constant 0 : index
      %22 = vector.load %arg11[%c0_18, %c0_19] : memref<64x32xf32, #tpu.memory_space<vmem>>, vector<64x32xf32>
      %23 = vector.broadcast %21 : vector<64x1xf32> to vector<64x32xf32>
      %24 = arith.mulf %23, %22 : vector<64x32xf32>
      %c0_20 = arith.constant 0 : index
      %c0_21 = arith.constant 0 : index
      %25 = vector.load %arg8[%c0_20, %c0_21] : memref<1x32xf32, #tpu.memory_space<vmem>>, vector<1x32xf32>
      %26 = vector.broadcast %25 : vector<1x32xf32> to vector<64x32xf32>
      %27 = arith.mulf %24, %26 : vector<64x32xf32>
      %c0_22 = arith.constant 0 : index
      %c0_23 = arith.constant 0 : index
      %28 = vector.load %arg9[%c0_22, %c0_23] : memref<1x32xf32, #tpu.memory_space<vmem>>, vector<1x32xf32>
      %29 = vector.broadcast %28 : vector<1x32xf32> to vector<64x32xf32>
      %30 = arith.addf %27, %29 : vector<64x32xf32>
      %cst_24 = arith.constant 0.000000e+00 : f32
      %31 = vector.broadcast %cst_24 : f32 to vector<64x32xf32>
      %32 = arith.maximumf %30, %31 : vector<64x32xf32>
      %c0_25 = arith.constant 0 : index
      %c0_26 = arith.constant 0 : index
      %33 = vector.load %arg10[%c0_25, %c0_26] : memref<64x32xf32, #tpu.memory_space<vmem>>, vector<64x32xf32>
      tpu.vector_store %arg10[%c0_25, %c0_26], %32 {strides = array<i32>} : memref<64x32xf32, #tpu.memory_space<vmem>>, vector<64x32xf32>,
    } else {
    }
    return
  }
  func.func @transform_0(%arg0: i32, %arg1: i32) -> (i32, i32) {
    %c0_i32 = arith.constant 0 : i32
    %c0_i32_0 = arith.constant 0 : i32
    return %arg1, %c0_i32 : i32, i32
  }
  func.func @transform_1(%arg0: i32, %arg1: i32) -> (i32, i32) {
    %c0_i32 = arith.constant 0 : i32
    return %arg0, %arg1 : i32, i32
  }
  func.func @transform_2(%arg0: i32, %arg1: i32) -> (i32, i32) {
    %c0_i32 = arith.constant 0 : i32
    %c0_i32_0 = arith.constant 0 : i32
    return %arg1, %c0_i32 : i32, i32
  }
  func.func @transform_3(%arg0: i32, %arg1: i32) -> (i32, i32) {
    %c0_i32 = arith.constant 0 : i32
    %c0_i32_0 = arith.constant 0 : i32
    return %arg0, %c0_i32 : i32, i32
  }
  func.func @transform_4(%arg0: i32, %arg1: i32) -> (i32, i32) {
    %c0_i32 = arith.constant 0 : i32
    %c0_i32_0 = arith.constant 0 : i32
    %c0_i32_1 = arith.constant 0 : i32
    return %c0_i32, %c0_i32_0 : i32, i32
  }
  func.func @transform_5(%arg0: i32, %arg1: i32) -> (i32, i32) {
    %c0_i32 = arith.constant 0 : i32
    %c0_i32_0 = arith.constant 0 : i32
    %c0_i32_1 = arith.constant 0 : i32
    return %c0_i32, %c0_i32_0 : i32, i32
  }
  func.func @transform_6(%arg0: i32, %arg1: i32) -> (i32, i32) {
    %c0_i32 = arith.constant 0 : i32
    %c0_i32_0 = arith.constant 0 : i32
    %c0_i32_1 = arith.constant 0 : i32
    return %c0_i32, %c0_i32_0 : i32, i32
  }
  func.func @transform_7(%arg0: i32, %arg1: i32) -> (i32, i32) {
    %c0_i32 = arith.constant 0 : i32
    %c0_i32_0 = arith.constant 0 : i32
    %c0_i32_1 = arith.constant 0 : i32
    return %c0_i32, %c0_i32_0 : i32, i32
  }
  func.func @transform_8(%arg0: i32, %arg1: i32) -> (i32, i32) {
    %c0_i32 = arith.constant 0 : i32
    %c0_i32_0 = arith.constant 0 : i32
    return %arg0, %c0_i32 : i32, i32
  }
}

module attributes {stable_mosaic.version = 11 : i64} {
  func.func @_layer2_kernel(%arg0: i32, %arg1: i32, %arg2: memref<128x32xf32, #tpu.memory_space<vmem>>, %arg3: memref<64x128xbf16, #tpu.memory_space<vmem>>, %arg4: memref<128x1xf32, #tpu.memory_space<vmem>>, %arg5: memref<64x1xf32, #tpu.memory_space<vmem>>, %arg6: memref<32x8xf32, #tpu.memory_space<vmem>>, %arg7: memref<1x8xf32, #tpu.memory_space<vmem>>, %arg8: memref<64x8xf32, #tpu.memory_space<vmem>>, %arg9: memref<64x8xf32, #tpu.memory_space<vmem>>) attributes {dimension_semantics = [#tpu.dimension_semantics<parallel>, #tpu.dimension_semantics<arbitrary>], iteration_bounds = array<i64: 4, 2>, scalar_prefetch = 0 : i64, scratch_operands = 1 : i64, tpu.core_type = #tpu.core_type<tc>, window_params = [{transform_indices = @transform_0, window_bounds = array<i64: 128, 32>}, {transform_indices = @transform_1, window_bounds = array<i64: 64, 128>}, {transform_indices = @transform_2, window_bounds = array<i64: 128, 1>}, {transform_indices = @transform_3, window_bounds = array<i64: 64, 1>}, {pipeline_mode = #tpu.pipeline_mode<synchronous>, transform_indices = @transform_4, window_bounds = array<i64: 32, 8>}, {pipeline_mode = #tpu.pipeline_mode<synchronous>, transform_indices = @transform_5, window_bounds = array<i64: 1, 8>}, {transform_indices = @transform_6, window_bounds = array<i64: 64, 8>}]} {
    %c0_i32 = arith.constant 0 : i32
    %0 = arith.cmpi eq, %arg1, %c0_i32 : i32
    %1 = arith.extui %0 : i1 to i32
    %c0_i32_0 = arith.constant 0 : i32
    %2 = arith.cmpi ne, %1, %c0_i32_0 : i32
    scf.if %2 {
      %cst_16 = arith.constant 0.000000e+00 : f32
      %21 = vector.broadcast %cst_16 : f32 to vector<64x8xf32>
      %c0_17 = arith.constant 0 : index
      %c0_18 = arith.constant 0 : index
      %22 = vector.load %arg9[%c0_17, %c0_18] : memref<64x8xf32, #tpu.memory_space<vmem>>, vector<64x8xf32>
      tpu.vector_store %arg9[%c0_17, %c0_18], %21 {strides = array<i32>} : memref<64x8xf32, #tpu.memory_space<vmem>>, vector<64x8xf32>,
    } else {
    }
    %c0 = arith.constant 0 : index
    %c0_1 = arith.constant 0 : index
    %3 = vector.load %arg2[%c0, %c0_1] : memref<128x32xf32, #tpu.memory_space<vmem>>, vector<128x32xf32>
    %c0_2 = arith.constant 0 : index
    %c0_3 = arith.constant 0 : index
    %4 = vector.load %arg6[%c0_2, %c0_3] : memref<32x8xf32, #tpu.memory_space<vmem>>, vector<32x8xf32>
    %cst = arith.constant dense<0.000000e+00> : vector<128x8xf32>
    %5 = tpu.matmul %3, %4, %cst {dimension_numbers = #tpu.dot_dimension_numbers<[1], [0], [0], [1], [0, 0, 1, 1], [], []>} : vector<128x32xf32>, vector<32x8xf32>, vector<128x8xf32> -> vector<128x8xf32>
    %c0_4 = arith.constant 0 : index
    %c0_5 = arith.constant 0 : index
    %6 = vector.load %arg7[%c0_4, %c0_5] : memref<1x8xf32, #tpu.memory_space<vmem>>, vector<1x8xf32>
    %7 = vector.broadcast %6 : vector<1x8xf32> to vector<128x8xf32>
    %8 = arith.addf %5, %7 : vector<128x8xf32>
    %c0_6 = arith.constant 0 : index
    %c0_7 = arith.constant 0 : index
    %9 = vector.load %arg4[%c0_6, %c0_7] : memref<128x1xf32, #tpu.memory_space<vmem>>, vector<128x1xf32>
    %10 = vector.broadcast %9 : vector<128x1xf32> to vector<128x8xf32>
    %11 = arith.mulf %10, %8 : vector<128x8xf32>
    %12 = arith.truncf %11 : vector<128x8xf32> to vector<128x8xbf16>
    %c0_8 = arith.constant 0 : index
    %c0_9 = arith.constant 0 : index
    %13 = vector.load %arg9[%c0_8, %c0_9] : memref<64x8xf32, #tpu.memory_space<vmem>>, vector<64x8xf32>
    %c0_10 = arith.constant 0 : index
    %c0_11 = arith.constant 0 : index
    %14 = vector.load %arg3[%c0_10, %c0_11] : memref<64x128xbf16, #tpu.memory_space<vmem>>, vector<64x128xbf16>
    %cst_12 = arith.constant dense<0.000000e+00> : vector<64x8xf32>
    %15 = tpu.matmul %14, %12, %cst_12 {dimension_numbers = #tpu.dot_dimension_numbers<[1], [0], [0], [1], [0, 0, 1, 1], [], []>} : vector<64x128xbf16>, vector<128x8xbf16>, vector<64x8xf32> -> vector<64x8xf32>
    %16 = arith.addf %13, %15 : vector<64x8xf32>
    %c0_13 = arith.constant 0 : index
    %c0_14 = arith.constant 0 : index
    %17 = vector.load %arg9[%c0_13, %c0_14] : memref<64x8xf32, #tpu.memory_space<vmem>>, vector<64x8xf32>
    tpu.vector_store %arg9[%c0_13, %c0_14], %16 {strides = array<i32>} : memref<64x8xf32, #tpu.memory_space<vmem>>, vector<64x8xf32>,
    %c1_i32 = arith.constant 1 : i32
    %18 = arith.cmpi eq, %arg1, %c1_i32 : i32
    %19 = arith.extui %18 : i1 to i32
    %c0_i32_15 = arith.constant 0 : i32
    %20 = arith.cmpi ne, %19, %c0_i32_15 : i32
    scf.if %20 {
      %c0_16 = arith.constant 0 : index
      %c0_17 = arith.constant 0 : index
      %21 = vector.load %arg5[%c0_16, %c0_17] : memref<64x1xf32, #tpu.memory_space<vmem>>, vector<64x1xf32>
      %c0_18 = arith.constant 0 : index
      %c0_19 = arith.constant 0 : index
      %22 = vector.load %arg9[%c0_18, %c0_19] : memref<64x8xf32, #tpu.memory_space<vmem>>, vector<64x8xf32>
      %23 = vector.broadcast %21 : vector<64x1xf32> to vector<64x8xf32>
      %24 = arith.mulf %23, %22 : vector<64x8xf32>
      %cst_20 = arith.constant dense<0xFF800000> : vector<64xf32>
      %25 = vector.multi_reduction <maximumf>, %24, %cst_20 [1] : vector<64x8xf32> to vector<64xf32>
      %26 = vector.shape_cast %25 : vector<64xf32> to vector<64x1xf32>
      %27 = vector.broadcast %26 : vector<64x1xf32> to vector<64x8xf32>
      %28 = arith.subf %24, %27 : vector<64x8xf32>
      %29 = math.exp %28 : vector<64x8xf32>
      %cst_21 = arith.constant dense<0.000000e+00> : vector<64xf32>
      %30 = vector.multi_reduction <add>, %29, %cst_21 [1] : vector<64x8xf32> to vector<64xf32>
      %31 = vector.shape_cast %30 : vector<64xf32> to vector<64x1xf32>
      %32 = math.log %31 : vector<64x1xf32>
      %33 = vector.broadcast %32 : vector<64x1xf32> to vector<64x8xf32>
      %34 = arith.subf %28, %33 : vector<64x8xf32>
      %c0_22 = arith.constant 0 : index
      %c0_23 = arith.constant 0 : index
      %35 = vector.load %arg8[%c0_22, %c0_23] : memref<64x8xf32, #tpu.memory_space<vmem>>, vector<64x8xf32>
      tpu.vector_store %arg8[%c0_22, %c0_23], %34 {strides = array<i32>} : memref<64x8xf32, #tpu.memory_space<vmem>>, vector<64x8xf32>,
    } else {
    }
    return
  }
  func.func @transform_0(%arg0: i32, %arg1: i32) -> (i32, i32) {
    %c0_i32 = arith.constant 0 : i32
    %c0_i32_0 = arith.constant 0 : i32
    return %arg1, %c0_i32 : i32, i32
  }
  func.func @transform_1(%arg0: i32, %arg1: i32) -> (i32, i32) {
    %c0_i32 = arith.constant 0 : i32
    return %arg0, %arg1 : i32, i32
  }
  func.func @transform_2(%arg0: i32, %arg1: i32) -> (i32, i32) {
    %c0_i32 = arith.constant 0 : i32
    %c0_i32_0 = arith.constant 0 : i32
    return %arg1, %c0_i32 : i32, i32
  }
  func.func @transform_3(%arg0: i32, %arg1: i32) -> (i32, i32) {
    %c0_i32 = arith.constant 0 : i32
    %c0_i32_0 = arith.constant 0 : i32
    return %arg0, %c0_i32 : i32, i32
  }
  func.func @transform_4(%arg0: i32, %arg1: i32) -> (i32, i32) {
    %c0_i32 = arith.constant 0 : i32
    %c0_i32_0 = arith.constant 0 : i32
    %c0_i32_1 = arith.constant 0 : i32
    return %c0_i32, %c0_i32_0 : i32, i32
  }
  func.func @transform_5(%arg0: i32, %arg1: i32) -> (i32, i32) {
    %c0_i32 = arith.constant 0 : i32
    %c0_i32_0 = arith.constant 0 : i32
    %c0_i32_1 = arith.constant 0 : i32
    return %c0_i32, %c0_i32_0 : i32, i32
  }
  func.func @transform_6(%arg0: i32, %arg1: i32) -> (i32, i32) {
    %c0_i32 = arith.constant 0 : i32
    %c0_i32_0 = arith.constant 0 : i32
    return %arg0, %c0_i32 : i32, i32
  }
}

</mosaic_0001>

<llo_original>
// kernel: gcn_forward.3
$region0: #{gcn_forward.3}
  #allocation0 [shape = 'u32[]', space=smem, size = 0x4, offset = 0x4, fixed_abs, tag = 'smem constant byte address 0x4 - core index']
  #allocation1 [shape = 'u32[144,128]{1,0:T(1,128)}', space=vmem, size = 0x12000, scoped, tag = 'internal scratch']
  #allocation2 [shape = 'f32[64,8]{1,0:T(8,128)}', space=vmem, size = 0x8000, scoped, tag = 'scratch operand']
  %s0 = inlined_call_operand.vmem [shape: f32[256,32], index: 0, kind: input, shape index: {}]
  %s1 = inlined_call_operand.vmem [shape: bf16[256,256], index: 1, kind: input, shape index: {}]
  %s2 = inlined_call_operand.vmem [shape: f32[256,1], index: 2, kind: input, shape index: {}, may-alias: {2,3}]
  %s3 = inlined_call_operand.vmem [shape: f32[256,1], index: 3, kind: input, shape index: {}, may-alias: {2,3}]
  %s4 = inlined_call_operand.vmem [shape: f32[32,8], index: 4, kind: input, shape index: {}]
  %s5 = inlined_call_operand.vmem [shape: f32[1,8], index: 5, kind: input, shape index: {}]
  %s6 = inlined_call_operand.vmem [shape: f32[256,8], index: 6, kind: output, shape index: {}]
  %s7 = sld [smem:[#allocation0]]
  $region106: #{gcn_forward.3} parent=0
    _
  %s9 = ssub.s32 1, %s7
  %s10 = scalar_select 0, %s9, %s7
  $region1: #{gcn_forward.3} parent=0
    #allocation3 [shape = 'u8[32768]{0}', space=vmem, size = 0x8000, scoped, tag = 'input window, operand 1']
    loop: start=0, step=1, limit=10
    $region2: #{gcn_forward.3} parent=1 // loop_pre_header
      _
    $region3: #{gcn_forward.3} parent=1 // loop_header
      %s12 = sphi 0, %s16
      %p13 = scmp.ge.s32.totalorder %s12, 10
      %s19 = sphi 0, %s31
      %s20 = sphi 0, %s27
      %s21 = sphi 0, %s19
      %s22 = sphi 0, %s20
      %s23 = sphi 0, %s21
      %s24 = sphi 0, %s22
      %s34 = sphi 0, %s36
      %s37 = sphi 0, %s34
      %s38 = sphi 0, %s37
      %s54 = sphi 0, %s38
      %s62 = sphi 0, %s64
      %s65 = sphi 0, %s62
      %s66 = sphi 0, %s65
      %s82 = sphi 0, %s66
      %s88 = sphi 0, %s90
      %s91 = sphi 0, %s88
      %s92 = sphi 0, %s91
      %s108 = sphi 0, %s92
      %s114 = sphi 0, %s116
      %s117 = sphi 0, %s114
      %s118 = sphi 0, %s117
      %s134 = sphi 0, %s118
      %s138 = sphi 0, %s138
      %s140 = sphi 0, %s138
      %s141 = sphi 0, %s140
      %s155 = sphi 0, %s141
      %s159 = sphi 0, %s159
      %s161 = sphi 0, %s159
      %s162 = sphi 0, %s161
      %s176 = sphi 0, %s162
      %s182 = sphi 0, %s184
      %s185 = sphi 0, %s182
      %s186 = sphi 0, %s185
      %s202 = sphi 0, %s186
    $region4: #{gcn_forward.3} parent=1 // loop_header_branch
      %15 = sbr.rel (%p13) target = $region8
    $region5: #{gcn_forward.3} parent=1 // loop_body
      %s17 = ssub.s32 %s12, 1
      %s18 = ssub.s32 %s12, 2
      %s25 = sadd.s32 1, %s20
      %p26 = scmp.ge.s32.totalorder %s25, 2
      %s27 = scalar_select %p26, 0, %s25
      %s28 = sadd.s32 1, %s19
      %s29 = scalar_select %p26, %s28, %s19
      %p30 = scmp.ge.s32.totalorder %s29, 4
      %s31 = scalar_select %p30, 0, %s29
      %s32 = ssub.s32 %s20, %s27
      %p33 = scmp.eq.s32.totalorder %s32, 0
      %s35 = sadd.s32 %s34, 1
      %s36 = scalar_select %p33, %s34, %s35
      %p39 = pneg %p33
      %p40 = scmp.eq.s32.totalorder %s12, 7
      %p41 = por %p39, %p40
      %p42 = scmp.ne.s32.totalorder %s34, %s37
      %p43 = scmp.eq.s32.totalorder %s12, 0
      %p44 = por %p42, %p43
      %p45 = scmp.ne.s32.totalorder %s34, %s37
      %p46 = scmp.eq.s32.totalorder %s17, 7
      %p47 = por %p45, %p46
      %p48 = scmp.ne.s32.totalorder %s37, %s38
      %p49 = scmp.eq.s32.totalorder %s17, 0
      %p50 = por %p48, %p49
      %p51 = scmp.ne.s32.totalorder %s37, %s38
      %p52 = scmp.eq.s32.totalorder %s18, 7
      %p53 = por %p51, %p52
      %p55 = scmp.ne.s32.totalorder %s38, %s54
      %p56 = scmp.eq.s32.totalorder %s18, 0
      %p57 = por %p55, %p56
      %s58 = ssub.s32 %s19, %s31
      %s59 = ssub.s32 %s20, %s27
      %s60 = sor.u32 %s58, %s59
      %p61 = scmp.eq.s32.totalorder %s60, 0
      %s63 = sadd.s32 %s62, 1
      %s64 = scalar_select %p61, %s62, %s63
      %p67 = pneg %p61
      %p68 = scmp.eq.s32.totalorder %s12, 7
      %p69 = por %p67, %p68
      %p70 = scmp.ne.s32.totalorder %s62, %s65
      %p71 = scmp.eq.s32.totalorder %s12, 0
      %p72 = por %p70, %p71
      %p73 = scmp.ne.s32.totalorder %s62, %s65
      %p74 = scmp.eq.s32.totalorder %s17, 7
      %p75 = por %p73, %p74
      %p76 = scmp.ne.s32.totalorder %s65, %s66
      %p77 = scmp.eq.s32.totalorder %s17, 0
      %p78 = por %p76, %p77
      %p79 = scmp.ne.s32.totalorder %s65, %s66
      %p80 = scmp.eq.s32.totalorder %s18, 7
      %p81 = por %p79, %p80
      %p83 = scmp.ne.s32.totalorder %s66, %s82
      %p84 = scmp.eq.s32.totalorder %s18, 0
      %p85 = por %p83, %p84
      %s86 = ssub.s32 %s20, %s27
      %p87 = scmp.eq.s32.totalorder %s86, 0
      %s89 = sadd.s32 %s88, 1
      %s90 = scalar_select %p87, %s88, %s89
      %p93 = pneg %p87
      %p94 = scmp.eq.s32.totalorder %s12, 7
      %p95 = por %p93, %p94
      %p96 = scmp.ne.s32.totalorder %s88, %s91
      %p97 = scmp.eq.s32.totalorder %s12, 0
      %p98 = por %p96, %p97
      %p99 = scmp.ne.s32.totalorder %s88, %s91
      %p100 = scmp.eq.s32.totalorder %s17, 7
      %p101 = por %p99, %p100
      %p102 = scmp.ne.s32.totalorder %s91, %s92
      %p103 = scmp.eq.s32.totalorder %s17, 0
      %p104 = por %p102, %p103
      %p105 = scmp.ne.s32.totalorder %s91, %s92
      %p106 = scmp.eq.s32.totalorder %s18, 7
      %p107 = por %p105, %p106
      %p109 = scmp.ne.s32.totalorder %s92, %s108
      %p110 = scmp.eq.s32.totalorder %s18, 0
      %p111 = por %p109, %p110
      %s112 = ssub.s32 %s19, %s31
      %p113 = scmp.eq.s32.totalorder %s112, 0
      %s115 = sadd.s32 %s114, 1
      %s116 = scalar_select %p113, %s114, %s115
      %p119 = pneg %p113
      %p120 = scmp.eq.s32.totalorder %s12, 7
      %p121 = por %p119, %p120
      %p122 = scmp.ne.s32.totalorder %s114, %s117
      %p123 = scmp.eq.s32.totalorder %s12, 0
      %p124 = por %p122, %p123
      %p125 = scmp.ne.s32.totalorder %s114, %s117
      %p126 = scmp.eq.s32.totalorder %s17, 7
      %p127 = por %p125, %p126
      %p128 = scmp.ne.s32.totalorder %s117, %s118
      %p129 = scmp.eq.s32.totalorder %s17, 0
      %p130 = por %p128, %p129
      %p131 = scmp.ne.s32.totalorder %s117, %s118
      %p132 = scmp.eq.s32.totalorder %s18, 7
      %p133 = por %p131, %p132
      %p135 = scmp.ne.s32.totalorder %s118, %s134
      %p136 = scmp.eq.s32.totalorder %s18, 0
      %p137 = por %p135, %p136
      %s139 = sadd.s32 %s138, 1
      %p142 = scmp.eq.s32.totalorder %s12, 7
      %p143 = scmp.ne.s32.totalorder %s138, %s140
      %p144 = scmp.eq.s32.totalorder %s12, 0
      %p145 = por %p143, %p144
      %p146 = scmp.ne.s32.totalorder %s138, %s140
      %p147 = scmp.eq.s32.totalorder %s17, 7
      %p148 = por %p146, %p147
      %p149 = scmp.ne.s32.totalorder %s140, %s141
      %p150 = scmp.eq.s32.totalorder %s17, 0
      %p151 = por %p149, %p150
      %p152 = scmp.ne.s32.totalorder %s140, %s141
      %p153 = scmp.eq.s32.totalorder %s18, 7
      %p154 = por %p152, %p153
      %p156 = scmp.ne.s32.totalorder %s141, %s155
      %p157 = scmp.eq.s32.totalorder %s18, 0
      %p158 = por %p156, %p157
      %s160 = sadd.s32 %s159, 1
      %p163 = scmp.eq.s32.totalorder %s12, 7
      %p164 = scmp.ne.s32.totalorder %s159, %s161
      %p165 = scmp.eq.s32.totalorder %s12, 0
      %p166 = por %p164, %p165
      %p167 = scmp.ne.s32.totalorder %s159, %s161
      %p168 = scmp.eq.s32.totalorder %s17, 7
      %p169 = por %p167, %p168
      %p170 = scmp.ne.s32.totalorder %s161, %s162
      %p171 = scmp.eq.s32.totalorder %s17, 0
      %p172 = por %p170, %p171
      %p173 = scmp.ne.s32.totalorder %s161, %s162
      %p174 = scmp.eq.s32.totalorder %s18, 7
      %p175 = por %p173, %p174
      %p177 = scmp.ne.s32.totalorder %s162, %s176
      %p178 = scmp.eq.s32.totalorder %s18, 0
      %p179 = por %p177, %p178
      %s180 = ssub.s32 %s19, %s31
      %p181 = scmp.eq.s32.totalorder %s180, 0
      %s183 = sadd.s32 %s182, 1
      %s184 = scalar_select %p181, %s182, %s183
      %p187 = pneg %p181
      %p188 = scmp.eq.s32.totalorder %s12, 7
      %p189 = por %p187, %p188
      %p190 = scmp.ne.s32.totalorder %s182, %s185
      %p191 = scmp.eq.s32.totalorder %s12, 0
      %p192 = por %p190, %p191
      %p193 = scmp.ne.s32.totalorder %s182, %s185
      %p194 = scmp.eq.s32.totalorder %s17, 7
      %p195 = por %p193, %p194
      %p196 = scmp.ne.s32.totalorder %s185, %s186
      %p197 = scmp.eq.s32.totalorder %s17, 0
      %p198 = por %p196, %p197
      %p199 = scmp.ne.s32.totalorder %s185, %s186
      %p200 = scmp.eq.s32.totalorder %s18, 7
      %p201 = por %p199, %p200
      %p203 = scmp.ne.s32.totalorder %s186, %s202
      %p204 = scmp.eq.s32.totalorder %s18, 0
      %p205 = por %p203, %p204
      %p206 = scmp.le.s32.totalorder 1, %s12
      %p207 = scmp.lt.s32.totalorder %s12, 9
      %p208 = pnand %p206, %p207
      %p209 = pneg %p208
      // Predicated region
      $region9: #{gcn_forward.3} parent=5 // pred_check
        _
      $region10: #{gcn_forward.3} parent=5 // pred_check_branch
        %211 = sbr.rel (%p208) target = $region12
      $region11: #{gcn_forward.3} parent=5 // pred_region
        %s212 = ssub.s32 %s12, 1
        // Predicated region
        $region13: #{gcn_forward.3} parent=11 // pred_check
          %p213 = pneg %p151
        $region14: #{gcn_forward.3} parent=11 // pred_check_branch
          %215 = sbr.rel (%p213) target = $region16
        $region15: #{gcn_forward.3} parent=11 // pred_region
          _
        $region16: #{gcn_forward.3} parent=11 // pred_fallthru
          _
        // Predicated region
        $region17: #{gcn_forward.3} parent=11 // pred_check
          %p216 = pneg %p172
        $region18: #{gcn_forward.3} parent=11 // pred_check_branch
          %218 = sbr.rel (%p216) target = $region20
        $region19: #{gcn_forward.3} parent=11 // pred_region
          _
        $region20: #{gcn_forward.3} parent=11 // pred_fallthru
          _
      $region12: #{gcn_forward.3} parent=5 // pred_fallthru
        _
      %p219 = scmp.lt.s32.totalorder %s12, 8
      // Predicated region
      $region21: #{gcn_forward.3} parent=5 // pred_check
        %p220 = pneg %p219
      $region22: #{gcn_forward.3} parent=5 // pred_check_branch
        %222 = sbr.rel (%p220) target = $region24
      $region23: #{gcn_forward.3} parent=5 // pred_region
        // Predicated region
        $region25: #{gcn_forward.3} parent=23 // pred_check
          %p223 = pneg %p44
        $region26: #{gcn_forward.3} parent=23 // pred_check_branch
          %225 = sbr.rel (%p223) target = $region28
        $region27: #{gcn_forward.3} parent=23 // pred_region
          %s226 = smul.u32 16, %s20
          %p227 = scmp.lt.s32.totalorder %s226, 31
          %s228 = scalar_select %p227, %s226, 31
          %s229 = smul.addr %s228, 8
          %s230 = scalar_lea.vmem %s0, %s229
          %s231 = smul.u32 16, %s20
        $region28: #{gcn_forward.3} parent=23 // pred_fallthru
          _
        // Predicated region
        $region29: #{gcn_forward.3} parent=23 // pred_check
          %p232 = pneg %p72
        $region30: #{gcn_forward.3} parent=23 // pred_check_branch
          %234 = sbr.rel (%p232) target = $region32
        $region31: #{gcn_forward.3} parent=23 // pred_region
          %s235 = sand.u32 %s62, 1
          %s236 = sand.u32 %s62, 1
          %s237 = smul.addr %s236, 32
          %s238 = scalar_lea.vmem [#allocation3], %s237
          %s239 = smul.u32 8, %s19
          %s240 = smul.addr %s239, 2
          %s241 = sadd.s32 %s20, %s240
          %s242 = smul.addr %s241, 4
          %s243 = scalar_lea.vmem %s1, %s242
          // Predicated region
          $region33: #{gcn_forward.3} parent=31 // pred_check
            _
          $region34: #{gcn_forward.3} parent=31 // pred_check_branch
            %245 = sbr.rel (0) target = $region36
          $region35: #{gcn_forward.3} parent=31 // pred_region
            // Predicated region
            $region37: #{gcn_forward.3} parent=35 // pred_check
              _
            $region38: #{gcn_forward.3} parent=35 // pred_check_branch
              %247 = sbr.rel target = $region40
            $region39: #{gcn_forward.3} parent=35 // pred_region
              // Predicated region
              $region52: #{gcn_forward.3} parent=39 // pred_check
                _
              $region53: #{gcn_forward.3} parent=39 // pred_check_branch
                %276 = sbr.rel (0) target = $region55
              $region54: #{gcn_forward.3} parent=39 // pred_region
                loop: start=0, step=1, limit=1
                $region56: #{gcn_forward.3} parent=54 // loop_pre_header
                  _
                $region57: #{gcn_forward.3} parent=54 // loop_header
                  %s278 = sphi 0, %s282
                  %p279 = scmp.ge.s32.totalorder %s278, 1
                  %s283 = sphi %s243, %s243
                  %s284 = sphi %s238, %s238
                $region58: #{gcn_forward.3} parent=54 // loop_header_branch
                  %281 = sbr.rel (%p279) target = $region62
                $region59: #{gcn_forward.3} parent=54 // loop_body
                  _
                $region60: #{gcn_forward.3} parent=54 // loop_footer
                  %s282 = sadd.s32 1, %s278
                $region61: #{gcn_forward.3} parent=54 // loop_footer_branch
                  %277 = sbr.rel target = $region57
                $region62: #{gcn_forward.3} parent=54 // loop_exit
                  _
                loop: start=0, step=1, limit=1
                $region63: #{gcn_forward.3} parent=54 // loop_pre_header
                  _
                $region64: #{gcn_forward.3} parent=54 // loop_header
                  %s287 = sphi 0, %s291
                  %p288 = scmp.ge.s32.totalorder %s287, 1
                  %s292 = sphi %s243, %s243
                  %s293 = sphi %s238, %s238
                $region65: #{gcn_forward.3} parent=54 // loop_header_branch
                  %290 = sbr.rel (%p288) target = $region69
                $region66: #{gcn_forward.3} parent=54 // loop_body
                  %v294 = vld [vmem:[%s292] sm:$0xf]
                  %295 = vst [vmem:[%s293] sm:$0xf] %v294
                  %v296 = vld [vmem:[%s292 + $0x8] sm:$0xf]
                  %297 = vst [vmem:[%s293 + $0x4] sm:$0xf] %v296
                  %v298 = vld [vmem:[%s292 + $0x10] sm:$0xf]
                  %299 = vst [vmem:[%s293 + $0x8] sm:$0xf] %v298
                  %v300 = vld [vmem:[%s292 + $0x18] sm:$0xf]
                  %301 = vst [vmem:[%s293 + $0xc] sm:$0xf] %v300
                  %v302 = vld [vmem:[%s292 + $0x20] sm:$0xf]
                  %303 = vst [vmem:[%s293 + $0x10] sm:$0xf] %v302
                  %v304 = vld [vmem:[%s292 + $0x28] sm:$0xf]
                  %305 = vst [vmem:[%s293 + $0x14] sm:$0xf] %v304
                  %v306 = vld [vmem:[%s292 + $0x30] sm:$0xf]
                  %307 = vst [vmem:[%s293 + $0x18] sm:$0xf] %v306
                  %v308 = vld [vmem:[%s292 + $0x38] sm:$0xf]
                  %309 = vst [vmem:[%s293 + $0x1c] sm:$0xf] %v308
                $region67: #{gcn_forward.3} parent=54 // loop_footer
                  %s291 = sadd.s32 1, %s287
                $region68: #{gcn_forward.3} parent=54 // loop_footer_branch
                  %286 = sbr.rel target = $region64
                $region69: #{gcn_forward.3} parent=54 // loop_exit
                  _
              $region55: #{gcn_forward.3} parent=39 // pred_fallthru
                _
            $region40: #{gcn_forward.3} parent=35 // pred_fallthru
              _
            // Predicated region
            $region41: #{gcn_forward.3} parent=35 // pred_check
              _
            $region42: #{gcn_forward.3} parent=35 // pred_check_branch
              %249 = sbr.rel (0) target = $region44
            $region43: #{gcn_forward.3} parent=35 // pred_region
              loop: start=0, step=1, limit=1
              $region45: #{gcn_forward.3} parent=43 // loop_pre_header
                _
              $region46: #{gcn_forward.3} parent=43 // loop_header
                %s252 = sphi 0, %s256
                %p253 = scmp.ge.s32.totalorder %s252, 1
                %s257 = sphi %s243, %s243
                %s258 = sphi %s238, %s238
              $region47: #{gcn_forward.3} parent=43 // loop_header_branch
                %255 = sbr.rel (%p253) target = $region51
              $region48: #{gcn_forward.3} parent=43 // loop_body
                %v259 = vld [vmem:[%s257] sm:$0xf]
                %260 = vst [vmem:[%s258] sm:$0xf] %v259
                %v261 = vld [vmem:[%s257 + $0x8] sm:$0xf]
                %262 = vst [vmem:[%s258 + $0x4] sm:$0xf] %v261
                %v263 = vld [vmem:[%s257 + $0x10] sm:$0xf]
                %264 = vst [vmem:[%s258 + $0x8] sm:$0xf] %v263
                %v265 = vld [vmem:[%s257 + $0x18] sm:$0xf]
                %266 = vst [vmem:[%s258 + $0xc] sm:$0xf] %v265
                %v267 = vld [vmem:[%s257 + $0x20] sm:$0xf]
                %268 = vst [vmem:[%s258 + $0x10] sm:$0xf] %v267
                %v269 = vld [vmem:[%s257 + $0x28] sm:$0xf]
                %270 = vst [vmem:[%s258 + $0x14] sm:$0xf] %v269
                %v271 = vld [vmem:[%s257 + $0x30] sm:$0xf]
                %272 = vst [vmem:[%s258 + $0x18] sm:$0xf] %v271
                %v273 = vld [vmem:[%s257 + $0x38] sm:$0xf]
                %274 = vst [vmem:[%s258 + $0x1c] sm:$0xf] %v273
              $region49: #{gcn_forward.3} parent=43 // loop_footer
                %s256 = sadd.s32 1, %s252
              $region50: #{gcn_forward.3} parent=43 // loop_footer_branch
                %251 = sbr.rel target = $region46
              $region51: #{gcn_forward.3} parent=43 // loop_exit
                _
            $region44: #{gcn_forward.3} parent=35 // pred_fallthru
              _
          $region36: #{gcn_forward.3} parent=31 // pred_fallthru
            _
          %310 = vnop
        $region32: #{gcn_forward.3} parent=23 // pred_fallthru
          _
        // Predicated region
        $region70: #{gcn_forward.3} parent=23 // pred_check
          %p311 = pneg %p98
        $region71: #{gcn_forward.3} parent=23 // pred_check_branch
          %313 = sbr.rel (%p311) target = $region73
        $region72: #{gcn_forward.3} parent=23 // pred_region
          %s314 = smul.u32 16, %s20
          %p315 = scmp.lt.s32.totalorder %s314, 31
          %s316 = scalar_select %p315, %s314, 31
          %s317 = smul.addr %s316, 8
          %s318 = scalar_lea.vmem %s2, %s317
          %s319 = smul.u32 16, %s20
        $region73: #{gcn_forward.3} parent=23 // pred_fallthru
          _
        // Predicated region
        $region74: #{gcn_forward.3} parent=23 // pred_check
          %p320 = pneg %p124
        $region75: #{gcn_forward.3} parent=23 // pred_check_branch
          %322 = sbr.rel (%p320) target = $region77
        $region76: #{gcn_forward.3} parent=23 // pred_region
          %s323 = smul.u32 8, %s19
          %p324 = scmp.lt.s32.totalorder %s323, 31
          %s325 = scalar_select %p324, %s323, 31
          %s326 = smul.addr %s325, 8
          %s327 = scalar_lea.vmem %s3, %s326
          %s328 = smul.u32 8, %s19
        $region77: #{gcn_forward.3} parent=23 // pred_fallthru
          _
      $region24: #{gcn_forward.3} parent=5 // pred_fallthru
        _
      %p329 = scmp.le.s32.totalorder 1, %s12
      %p330 = scmp.lt.s32.totalorder %s12, 9
      %p331 = pnand %p329, %p330
      %p332 = pneg %p331
      // Predicated region
      $region78: #{gcn_forward.3} parent=5 // pred_check
        _
      $region79: #{gcn_forward.3} parent=5 // pred_check_branch
        %334 = sbr.rel (%p331) target = $region81
      $region80: #{gcn_forward.3} parent=5 // pred_region
        %s335 = ssub.s32 %s12, 1
        %s336 = sand.u32 %s65, 1
        %s337 = sand.u32 %s65, 1
        %s338 = smul.addr %s337, 32
        %s339 = scalar_lea.vmem [#allocation3], %s338
        // Predicated region
        $region82: #{gcn_forward.3} parent=80 // pred_check
          %p340 = pneg %p78
        $region83: #{gcn_forward.3} parent=80 // pred_check_branch
          %342 = sbr.rel (%p340) target = $region85
        $region84: #{gcn_forward.3} parent=80 // pred_region
          _
        $region85: #{gcn_forward.3} parent=80 // pred_fallthru
          _
        %s343 = smul.u32 16, %s22
        %p344 = scmp.lt.s32.totalorder %s343, 31
        %s345 = scalar_select %p344, %s343, 31
        %s346 = smul.addr %s345, 8
        %s347 = scalar_lea.vmem %s0, %s346
        %p348 = pneg %p50
        %p349 = pneg %p47
        %s350 = sand.u32 %s65, 1
        %s351 = sand.u32 %s65, 1
        %s352 = smul.addr %s351, 32
        %s353 = scalar_lea.vmem [#allocation3], %s352
        %p354 = pneg %p78
        %p355 = pneg %p75
        %s356 = smul.u32 16, %s22
        %p357 = scmp.lt.s32.totalorder %s356, 31
        %s358 = scalar_select %p357, %s356, 31
        %s359 = smul.addr %s358, 8
        %s360 = scalar_lea.vmem %s2, %s359
        %p361 = pneg %p104
        %p362 = pneg %p101
        %s363 = smul.u32 8, %s21
        %p364 = scmp.lt.s32.totalorder %s363, 31
        %s365 = scalar_select %p364, %s363, 31
        %s366 = smul.addr %s365, 8
        %s367 = scalar_lea.vmem %s3, %s366
        %p368 = pneg %p130
        %p369 = pneg %p127
        %p370 = pneg %p151
        %p371 = pneg %p148
        %p372 = pneg %p172
        %p373 = pneg %p169
        %p374 = pneg %p198
        %p375 = pneg %p195
        %s376 = smul.u32 8, %s21
        %p377 = scmp.lt.s32.totalorder %s376, 31
        %s378 = scalar_select %p377, %s376, 31
        %s379 = smul.addr %s378, 8
        %s380 = scalar_lea.vmem %s6, %s379
        %s381 = smul.u32 16, %s22
        %p382 = scmp.lt.s32.totalorder %s381, 31
        %s383 = scalar_select %p382, %s381, 31
        %s384 = smul.addr %s383, 8
        %s385 = scalar_lea.vmem %s0, %s384
        %s386 = smul.u32 16, %s22
        %s387 = smul.u32 8, %s21
        %s388 = smul.u32 16, %s22
        %p389 = scmp.lt.s32.totalorder %s388, 31
        %s390 = scalar_select %p389, %s388, 31
        %s391 = smul.addr %s390, 8
        %s392 = scalar_lea.vmem %s2, %s391
        %s393 = smul.u32 16, %s22
        %s394 = smul.u32 8, %s21
        %p395 = scmp.lt.s32.totalorder %s394, 31
        %s396 = scalar_select %p395, %s394, 31
        %s397 = smul.addr %s396, 8
        %s398 = scalar_lea.vmem %s3, %s397
        %s399 = smul.u32 8, %s21
        %s400 = smul.u32 8, %s21
        %p401 = scmp.lt.s32.totalorder %s400, 31
        %s402 = scalar_select %p401, %s400, 31
        %s403 = smul.addr %s402, 8
        %s404 = scalar_lea.vmem %s6, %s403
        %s405 = smul.u32 8, %s21
        %p407 = scmp.eq.s32.totalorder %s22, 0
        // Predicated region
        $region86: #{gcn_forward.3} parent=80 // pred_check
          %p408 = pneg %p407
        $region87: #{gcn_forward.3} parent=80 // pred_check_branch
          %410 = sbr.rel (%p408) target = $region89
        $region88: #{gcn_forward.3} parent=80 // pred_region
          %vm411 = vcmask 64512
          %412 = vst.msk [vmem:[#allocation2] sm:$0xff] %vm411, 0.0
          %413 = vst.msk [vmem:[#allocation2 + $0x8] sm:$0xff] %vm411, 0.0
          %414 = vst.msk [vmem:[#allocation2 + $0x10] sm:$0xff] %vm411, 0.0
          %415 = vst.msk [vmem:[#allocation2 + $0x18] sm:$0xff] %vm411, 0.0
          %416 = vst.msk [vmem:[#allocation2 + $0x20] sm:$0xff] %vm411, 0.0
          %417 = vst.msk [vmem:[#allocation2 + $0x28] sm:$0xff] %vm411, 0.0
          %418 = vst.msk [vmem:[#allocation2 + $0x30] sm:$0xff] %vm411, 0.0
          %419 = vst.msk [vmem:[#allocation2 + $0x38] sm:$0xff] %vm411, 0.0
        $region89: #{gcn_forward.3} parent=80 // pred_fallthru
          _
        %v420 = vld [vmem:[%s385] sm:$0xff]
        %v421 = vld [vmem:[%s385 + $0x8] sm:$0xff]
        %v422 = vld [vmem:[%s385 + $0x10] sm:$0xff]
        %v423 = vld [vmem:[%s385 + $0x18] sm:$0xff]
        %v424 = vld [vmem:[%s385 + $0x20] sm:$0xff]
        %v425 = vld [vmem:[%s385 + $0x28] sm:$0xff]
        %v426 = vld [vmem:[%s385 + $0x30] sm:$0xff]
        %v427 = vld [vmem:[%s385 + $0x38] sm:$0xff]
        %v428 = vld [vmem:[%s385 + $0x40] sm:$0xff]
        %v429 = vld [vmem:[%s385 + $0x48] sm:$0xff]
        %v430 = vld [vmem:[%s385 + $0x50] sm:$0xff]
        %v431 = vld [vmem:[%s385 + $0x58] sm:$0xff]
        %v432 = vld [vmem:[%s385 + $0x60] sm:$0xff]
        %v433 = vld [vmem:[%s385 + $0x68] sm:$0xff]
        %v434 = vld [vmem:[%s385 + $0x70] sm:$0xff]
        %v435 = vld [vmem:[%s385 + $0x78] sm:$0xff]
        %v436 = vld [vmem:[%s4] sm:$0xff]
        %v437 = vld [vmem:[%s4 + $0x8] sm:$0xff]
        %v438 = vld [vmem:[%s4 + $0x10] sm:$0xff]
        %v439 = vld [vmem:[%s4 + $0x18] sm:$0xff]
        %v440 = vld [vmem:[%s5] sm:$0x1]
        %v442 = vlaneseq
        %v443 = vshrl.u32 %v442, 7
        %v444 = vsub.s32 0, %v443
        %v445 = vrot.slane %v440, %v444
        %vm447 = vcmask 261120
        %v449 = vsel %vm447, %v420, 0
        %v452 = vsel %vm447, %v421, 0
        %v455 = vsel %vm447, %v422, 0
        %v458 = vsel %vm447, %v423, 0
        %v461 = vsel %vm447, %v424, 0
        %v464 = vsel %vm447, %v425, 0
        %v467 = vsel %vm447, %v426, 0
        %v470 = vsel %vm447, %v427, 0
        %v473 = vsel %vm447, %v428, 0
        %v476 = vsel %vm447, %v429, 0
        %v479 = vsel %vm447, %v430, 0
        %v482 = vsel %vm447, %v431, 0
        %v485 = vsel %vm447, %v432, 0
        %v488 = vsel %vm447, %v433, 0
        %v491 = vsel %vm447, %v434, 0
        %v494 = vsel %vm447, %v435, 0
        %496 = vmatprep.subr.mxu0 0.0
        %497 = vmatpush1.msra.mxu0 %v436
        %498 = vmatprep.subr.mxu0 0.0
        %499 = vmatpush1.msra.mxu0 %v437
        %500 = vmatprep.subr.mxu0 0.0
        %501 = vmatpush1.msra.mxu0 %v438
        %502 = vmatprep.subr.mxu0 0.0
        %503 = vmatpush1.msra.mxu0 %v439
        %504 = vmatprep.subr.mxu0 0.0
        %505 = vmatpush1.msra.mxu0 0.0
        %506 = vmatprep.subr.mxu0 0.0
        %507 = vmatpush1.msra.mxu0 0.0
        %508 = vmatprep.subr.mxu0 0.0
        %509 = vmatpush1.msra.mxu0 0.0
        %510 = vmatprep.subr.mxu0 0.0
        %511 = vmatpush1.msra.mxu0 0.0
        %512 = vmatprep.subr.mxu0 0.0
        %513 = vmatpush1.msra.mxu0 0.0
        %514 = vmatprep.subr.mxu0 0.0
        %515 = vmatpush1.msra.mxu0 0.0
        %516 = vmatprep.subr.mxu0 0.0
        %517 = vmatpush1.msra.mxu0 0.0
        %518 = vmatprep.subr.mxu0 0.0
        %519 = vmatpush1.msra.mxu0 0.0
        %520 = vmatprep.subr.mxu0 0.0
        %521 = vmatpush1.msra.mxu0 0.0
        %522 = vmatprep.subr.mxu0 0.0
        %523 = vmatpush1.msra.mxu0 0.0
        %524 = vmatprep.subr.mxu0 0.0
        %525 = vmatpush1.msra.mxu0 0.0
        %526 = vmatprep.subr.mxu0 0.0
        %527 = vmatpush1.msra.mxu0 0.0
        %528 = vmatprep.subr.mxu0 0.0
        %529 = vmatpush1.msra.mxu0 0.0
        %530 = vmatprep.subr.mxu0 0.0
        %531 = vmatpush1.msra.mxu0 0.0
        %532 = vmatprep.subr.mxu0 0.0
        %533 = vmatpush1.msra.mxu0 0.0
        %534 = vmatprep.subr.mxu0 0.0
        %535 = vmatpush1.msra.mxu0 0.0
        %536 = vmatprep.subr.mxu0 0.0
        %537 = vmatpush1.msra.mxu0 0.0
        %538 = vmatprep.subr.mxu0 0.0
        %539 = vmatpush1.msra.mxu0 0.0
        %540 = vmatprep.subr.mxu0 0.0
        %541 = vmatpush1.msra.mxu0 0.0
        %542 = vmatprep.subr.mxu0 0.0
        %543 = vmatpush1.msra.mxu0 0.0
        %544 = vmatprep.subr.mxu0 0.0
        %545 = vmatpush1.msra.mxu0 0.0
        %546 = vmatprep.subr.mxu0 0.0
        %547 = vmatpush1.msra.mxu0 0.0
        %548 = vmatprep.subr.mxu0 0.0
        %549 = vmatpush1.msra.mxu0 0.0
        %550 = vmatprep.subr.mxu0 0.0
        %551 = vmatpush1.msra.mxu0 0.0
        %552 = vmatprep.subr.mxu0 0.0
        %553 = vmatpush1.msra.mxu0 0.0
        %554 = vmatprep.subr.mxu0 0.0
        %555 = vmatpush1.msra.mxu0 0.0
        %556 = vmatprep.subr.mxu0 0.0
        %557 = vmatpush1.msra.mxu0 0.0
        %558 = vmatprep.subr.mxu0 0.0
        %559 = vmatpush1.msra.mxu0 0.0
        %560 = vmatprep.mubr.f32.mxu0 0.0
        %561 = vmatmul.mubr.f32.gmra.mrb[0].mxu0 %v449
        %v562 = vpop.f32.mrb[0].mxu0
        %v563 = vadd.f32 %v445, %v562
        %v564 = vpop.f32.mrb[0].mxu0
        %565 = vmatprep.mubr.f32.mxu0 0.0
        %566 = vmatmul.mubr.f32.gmra.mrb[0].mxu0 %v452
        %v567 = vpop.f32.mrb[0].mxu0
        %v568 = vadd.f32 %v445, %v567
        %v569 = vpop.f32.mrb[0].mxu0
        %570 = vmatprep.mubr.f32.mxu0 0.0
        %571 = vmatmul.mubr.f32.gmra.mrb[0].mxu0 %v455
        %v572 = vpop.f32.mrb[0].mxu0
        %v573 = vadd.f32 %v445, %v572
        %v574 = vpop.f32.mrb[0].mxu0
        %575 = vmatprep.mubr.f32.mxu0 0.0
        %576 = vmatmul.mubr.f32.gmra.mrb[0].mxu0 %v458
        %v577 = vpop.f32.mrb[0].mxu0
        %v578 = vadd.f32 %v445, %v577
        %v579 = vpop.f32.mrb[0].mxu0
        %580 = vmatprep.mubr.f32.mxu0 0.0
        %581 = vmatmul.mubr.f32.gmra.mrb[0].mxu0 %v461
        %v582 = vpop.f32.mrb[0].mxu0
        %v583 = vadd.f32 %v445, %v582
        %v584 = vpop.f32.mrb[0].mxu0
        %585 = vmatprep.mubr.f32.mxu0 0.0
        %586 = vmatmul.mubr.f32.gmra.mrb[0].mxu0 %v464
        %v587 = vpop.f32.mrb[0].mxu0
        %v588 = vadd.f32 %v445, %v587
        %v589 = vpop.f32.mrb[0].mxu0
        %590 = vmatprep.mubr.f32.mxu0 0.0
        %591 = vmatmul.mubr.f32.gmra.mrb[0].mxu0 %v467
        %v592 = vpop.f32.mrb[0].mxu0
        %v593 = vadd.f32 %v445, %v592
        %v594 = vpop.f32.mrb[0].mxu0
        %595 = vmatprep.mubr.f32.mxu0 0.0
        %596 = vmatmul.mubr.f32.gmra.mrb[0].mxu0 %v470
        %v597 = vpop.f32.mrb[0].mxu0
        %v598 = vadd.f32 %v445, %v597
        %v599 = vpop.f32.mrb[0].mxu0
        %600 = vmatprep.mubr.f32.mxu0 0.0
        %601 = vmatmul.mubr.f32.gmra.mrb[0].mxu0 %v473
        %v602 = vpop.f32.mrb[0].mxu0
        %v603 = vadd.f32 %v445, %v602
        %v604 = vpop.f32.mrb[0].mxu0
        %605 = vmatprep.mubr.f32.mxu0 0.0
        %606 = vmatmul.mubr.f32.gmra.mrb[0].mxu0 %v476
        %v607 = vpop.f32.mrb[0].mxu0
        %v608 = vadd.f32 %v445, %v607
        %v609 = vpop.f32.mrb[0].mxu0
        %610 = vmatprep.mubr.f32.mxu0 0.0
        %611 = vmatmul.mubr.f32.gmra.mrb[0].mxu0 %v479
        %v612 = vpop.f32.mrb[0].mxu0
        %v613 = vadd.f32 %v445, %v612
        %v614 = vpop.f32.mrb[0].mxu0
        %615 = vmatprep.mubr.f32.mxu0 0.0
        %616 = vmatmul.mubr.f32.gmra.mrb[0].mxu0 %v482
        %v617 = vpop.f32.mrb[0].mxu0
        %v618 = vadd.f32 %v445, %v617
        %v619 = vpop.f32.mrb[0].mxu0
        %620 = vmatprep.mubr.f32.mxu0 0.0
        %621 = vmatmul.mubr.f32.gmra.mrb[0].mxu0 %v485
        %v622 = vpop.f32.mrb[0].mxu0
        %v623 = vadd.f32 %v445, %v622
        %v624 = vpop.f32.mrb[0].mxu0
        %625 = vmatprep.mubr.f32.mxu0 0.0
        %626 = vmatmul.mubr.f32.gmra.mrb[0].mxu0 %v488
        %v627 = vpop.f32.mrb[0].mxu0
        %v628 = vadd.f32 %v445, %v627
        %v629 = vpop.f32.mrb[0].mxu0
        %630 = vmatprep.mubr.f32.mxu0 0.0
        %631 = vmatmul.mubr.f32.gmra.mrb[0].mxu0 %v491
        %v632 = vpop.f32.mrb[0].mxu0
        %v633 = vadd.f32 %v445, %v632
        %v634 = vpop.f32.mrb[0].mxu0
        %635 = vmatprep.mubr.f32.mxu0 0.0
        %636 = vmatmul.mubr.f32.gmra.mrb[0].mxu0 %v494
        %v637 = vpop.f32.mrb[0].mxu0
        %v638 = vadd.f32 %v445, %v637
        %v639 = vpop.f32.mrb[0].mxu0
        %640 = vdwg.mxu0
        %v641 = vld [vmem:[%s392] sm:$0xff]
        %v642 = vld [vmem:[%s392 + $0x8] sm:$0xff]
        %v643 = vld [vmem:[%s392 + $0x10] sm:$0xff]
        %v644 = vld [vmem:[%s392 + $0x18] sm:$0xff]
        %v645 = vld [vmem:[%s392 + $0x20] sm:$0xff]
        %v646 = vld [vmem:[%s392 + $0x28] sm:$0xff]
        %v647 = vld [vmem:[%s392 + $0x30] sm:$0xff]
        %v648 = vld [vmem:[%s392 + $0x38] sm:$0xff]
        %v649 = vld [vmem:[%s392 + $0x40] sm:$0xff]
        %v650 = vld [vmem:[%s392 + $0x48] sm:$0xff]
        %v651 = vld [vmem:[%s392 + $0x50] sm:$0xff]
        %v652 = vld [vmem:[%s392 + $0x58] sm:$0xff]
        %v653 = vld [vmem:[%s392 + $0x60] sm:$0xff]
        %v654 = vld [vmem:[%s392 + $0x68] sm:$0xff]
        %v655 = vld [vmem:[%s392 + $0x70] sm:$0xff]
        %v656 = vld [vmem:[%s392 + $0x78] sm:$0xff]
        %658 = vset.pattern.permute.xlu0 0
        %659 = vperm.xlu0 %658, %v641
        %v660 = vpop.permute.xlu0 %659
        %663 = vset.pattern.permute.xlu0 0
        %664 = vperm.xlu0 %663, %v642
        %v665 = vpop.permute.xlu0 %664
        %668 = vset.pattern.permute.xlu0 0
        %669 = vperm.xlu0 %668, %v643
        %v670 = vpop.permute.xlu0 %669
        %673 = vset.pattern.permute.xlu0 0
        %674 = vperm.xlu0 %673, %v644
        %v675 = vpop.permute.xlu0 %674
        %678 = vset.pattern.permute.xlu0 0
        %679 = vperm.xlu0 %678, %v645
        %v680 = vpop.permute.xlu0 %679
        %683 = vset.pattern.permute.xlu0 0
        %684 = vperm.xlu0 %683, %v646
        %v685 = vpop.permute.xlu0 %684
        %688 = vset.pattern.permute.xlu0 0
        %689 = vperm.xlu0 %688, %v647
        %v690 = vpop.permute.xlu0 %689
        %693 = vset.pattern.permute.xlu0 0
        %694 = vperm.xlu0 %693, %v648
        %v695 = vpop.permute.xlu0 %694
        %698 = vset.pattern.permute.xlu0 0
        %699 = vperm.xlu0 %698, %v649
        %v700 = vpop.permute.xlu0 %699
        %703 = vset.pattern.permute.xlu0 0
        %704 = vperm.xlu0 %703, %v650
        %v705 = vpop.permute.xlu0 %704
        %708 = vset.pattern.permute.xlu0 0
        %709 = vperm.xlu0 %708, %v651
        %v710 = vpop.permute.xlu0 %709
        %713 = vset.pattern.permute.xlu0 0
        %714 = vperm.xlu0 %713, %v652
        %v715 = vpop.permute.xlu0 %714
        %718 = vset.pattern.permute.xlu0 0
        %719 = vperm.xlu0 %718, %v653
        %v720 = vpop.permute.xlu0 %719
        %723 = vset.pattern.permute.xlu0 0
        %724 = vperm.xlu0 %723, %v654
        %v725 = vpop.permute.xlu0 %724
        %728 = vset.pattern.permute.xlu0 0
        %729 = vperm.xlu0 %728, %v655
        %v730 = vpop.permute.xlu0 %729
        %733 = vset.pattern.permute.xlu0 0
        %734 = vperm.xlu0 %733, %v656
        %v735 = vpop.permute.xlu0 %734
        %v737 = vmul.f32 %v660, %v563
        %v738 = vmul.f32 %v665, %v568
        %v739 = vmul.f32 %v670, %v573
        %v740 = vmul.f32 %v675, %v578
        %v741 = vmul.f32 %v680, %v583
        %v742 = vmul.f32 %v685, %v588
        %v743 = vmul.f32 %v690, %v593
        %v744 = vmul.f32 %v695, %v598
        %v745 = vmul.f32 %v700, %v603
        %v746 = vmul.f32 %v705, %v608
        %v747 = vmul.f32 %v710, %v613
        %v748 = vmul.f32 %v715, %v618
        %v749 = vmul.f32 %v720, %v623
        %v750 = vmul.f32 %v725, %v628
        %v751 = vmul.f32 %v730, %v633
        %v752 = vmul.f32 %v735, %v638
        %v753 = vpack.c.bf16 %v738, %v737
        %v754 = vpack.c.bf16 %v740, %v739
        %v755 = vpack.c.bf16 %v742, %v741
        %v756 = vpack.c.bf16 %v744, %v743
        %v757 = vpack.c.bf16 %v746, %v745
        %v758 = vpack.c.bf16 %v748, %v747
        %v759 = vpack.c.bf16 %v750, %v749
        %v760 = vpack.c.bf16 %v752, %v751
        %v761 = vld [vmem:[#allocation2] sm:$0xff]
        %v762 = vld [vmem:[#allocation2 + $0x8] sm:$0xff]
        %v763 = vld [vmem:[#allocation2 + $0x10] sm:$0xff]
        %v764 = vld [vmem:[#allocation2 + $0x18] sm:$0xff]
        %v765 = vld [vmem:[#allocation2 + $0x20] sm:$0xff]
        %v766 = vld [vmem:[#allocation2 + $0x28] sm:$0xff]
        %v767 = vld [vmem:[#allocation2 + $0x30] sm:$0xff]
        %v768 = vld [vmem:[#allocation2 + $0x38] sm:$0xff]
        %v769 = vld [vmem:[%s339] sm:$0xf]
        %v770 = vld [vmem:[%s339 + $0x4] sm:$0xf]
        %v771 = vld [vmem:[%s339 + $0x8] sm:$0xf]
        %v772 = vld [vmem:[%s339 + $0xc] sm:$0xf]
        %v773 = vld [vmem:[%s339 + $0x10] sm:$0xf]
        %v774 = vld [vmem:[%s339 + $0x14] sm:$0xf]
        %v775 = vld [vmem:[%s339 + $0x18] sm:$0xf]
        %v776 = vld [vmem:[%s339 + $0x1c] sm:$0xf]
        %v785 = vunpack.c.l.b16 %v769
        %v786 = vunpack.c.l.b16 %v770
        %v787 = vunpack.c.l.b16 %v771
        %v788 = vunpack.c.l.b16 %v772
        %v789 = vunpack.c.l.b16 %v773
        %v790 = vunpack.c.l.b16 %v774
        %v791 = vunpack.c.l.b16 %v775
        %v792 = vunpack.c.l.b16 %v776
        %v793 = vpack.c.b16 %v786, %v785
        %v794 = vpack.c.b16 %v788, %v787
        %v795 = vpack.c.b16 %v790, %v789
        %v796 = vpack.c.b16 %v792, %v791
        %801 = vmatprep.subr.bf16.mxu0 0
        %802 = vmatpush1.bf16.msra.mxu0 %v753
        %803 = vmatprep.subr.bf16.mxu0 0
        %804 = vmatpush1.bf16.msra.mxu0 %v754
        %805 = vmatprep.subr.bf16.mxu0 0
        %806 = vmatpush1.bf16.msra.mxu0 %v755
        %807 = vmatprep.subr.bf16.mxu0 0
        %808 = vmatpush1.bf16.msra.mxu0 %v756
        %809 = vmatprep.subr.bf16.mxu0 0
        %810 = vmatpush1.bf16.msra.mxu0 %v757
        %811 = vmatprep.subr.bf16.mxu0 0
        %812 = vmatpush1.bf16.msra.mxu0 %v758
        %813 = vmatprep.subr.bf16.mxu0 0
        %814 = vmatpush1.bf16.msra.mxu0 %v759
        %815 = vmatprep.subr.bf16.mxu0 0
        %816 = vmatpush1.bf16.msra.mxu0 %v760
        %817 = vmatprep.subr.bf16.mxu0 0
        %818 = vmatpush1.bf16.msra.mxu0 0
        %819 = vmatprep.subr.bf16.mxu0 0
        %820 = vmatpush1.bf16.msra.mxu0 0
        %821 = vmatprep.subr.bf16.mxu0 0
        %822 = vmatpush1.bf16.msra.mxu0 0
        %823 = vmatprep.subr.bf16.mxu0 0
        %824 = vmatpush1.bf16.msra.mxu0 0
        %825 = vmatprep.subr.bf16.mxu0 0
        %826 = vmatpush1.bf16.msra.mxu0 0
        %827 = vmatprep.subr.bf16.mxu0 0
        %828 = vmatpush1.bf16.msra.mxu0 0
        %829 = vmatprep.subr.bf16.mxu0 0
        %830 = vmatpush1.bf16.msra.mxu0 0
        %831 = vmatprep.subr.bf16.mxu0 0
        %832 = vmatpush1.bf16.msra.mxu0 0
        %833 = vmatprep.mubr.bf16.mxu0 0
        %834 = vmatmul.mubr.bf16.gmra.mrb[0].mxu0 %v793
        %v835 = vpop.f32.mrb[0].mxu0
        %v836 = vadd.f32 0.0, %v835
        %v837 = vpop.f32.mrb[0].mxu0
        %v838 = vpop.f32.mrb[0].mxu0
        %v839 = vadd.f32 0.0, %v838
        %v840 = vpop.f32.mrb[0].mxu0
        %841 = vmatprep.mubr.bf16.mxu0 0
        %842 = vmatmul.mubr.bf16.gmra.mrb[0].mxu0 %v794
        %v843 = vpop.f32.mrb[0].mxu0
        %v844 = vadd.f32 0.0, %v843
        %v845 = vpop.f32.mrb[0].mxu0
        %v846 = vpop.f32.mrb[0].mxu0
        %v847 = vadd.f32 0.0, %v846
        %v848 = vpop.f32.mrb[0].mxu0
        %849 = vmatprep.mubr.bf16.mxu0 0
        %850 = vmatmul.mubr.bf16.gmra.mrb[0].mxu0 %v795
        %v851 = vpop.f32.mrb[0].mxu0
        %v852 = vadd.f32 0.0, %v851
        %v853 = vpop.f32.mrb[0].mxu0
        %v854 = vpop.f32.mrb[0].mxu0
        %v855 = vadd.f32 0.0, %v854
        %v856 = vpop.f32.mrb[0].mxu0
        %857 = vmatprep.mubr.bf16.mxu0 0
        %858 = vmatmul.mubr.bf16.gmra.mrb[0].mxu0 %v796
        %v859 = vpop.f32.mrb[0].mxu0
        %v860 = vadd.f32 0.0, %v859
        %v861 = vpop.f32.mrb[0].mxu0
        %v862 = vpop.f32.mrb[0].mxu0
        %v863 = vadd.f32 0.0, %v862
        %v864 = vpop.f32.mrb[0].mxu0
        %865 = vdwg.mxu0
        %v866 = vadd.f32 %v761, %v836
        %v867 = vadd.f32 %v762, %v839
        %v868 = vadd.f32 %v763, %v844
        %v869 = vadd.f32 %v764, %v847
        %v870 = vadd.f32 %v765, %v852
        %v871 = vadd.f32 %v766, %v855
        %v872 = vadd.f32 %v767, %v860
        %v873 = vadd.f32 %v768, %v863
        %vm874 = vcmask 64512
        %875 = vst.msk [vmem:[#allocation2] sm:$0xff] %vm874, %v866
        %876 = vst.msk [vmem:[#allocation2 + $0x8] sm:$0xff] %vm874, %v867
        %877 = vst.msk [vmem:[#allocation2 + $0x10] sm:$0xff] %vm874, %v868
        %878 = vst.msk [vmem:[#allocation2 + $0x18] sm:$0xff] %vm874, %v869
        %879 = vst.msk [vmem:[#allocation2 + $0x20] sm:$0xff] %vm874, %v870
        %880 = vst.msk [vmem:[#allocation2 + $0x28] sm:$0xff] %vm874, %v871
        %881 = vst.msk [vmem:[#allocation2 + $0x30] sm:$0xff] %vm874, %v872
        %882 = vst.msk [vmem:[#allocation2 + $0x38] sm:$0xff] %vm874, %v873
        %p883 = scmp.eq.s32.totalorder %s22, 1
        // Predicated region
        $region90: #{gcn_forward.3} parent=80 // pred_check
          %p884 = pneg %p883
        $region91: #{gcn_forward.3} parent=80 // pred_check_branch
          %886 = sbr.rel (%p884) target = $region93
        $region92: #{gcn_forward.3} parent=80 // pred_region
          %v887 = vld [vmem:[%s398] sm:$0xff]
          %v888 = vld [vmem:[%s398 + $0x8] sm:$0xff]
          %v889 = vld [vmem:[%s398 + $0x10] sm:$0xff]
          %v890 = vld [vmem:[%s398 + $0x18] sm:$0xff]
          %v891 = vld [vmem:[%s398 + $0x20] sm:$0xff]
          %v892 = vld [vmem:[%s398 + $0x28] sm:$0xff]
          %v893 = vld [vmem:[%s398 + $0x30] sm:$0xff]
          %v894 = vld [vmem:[%s398 + $0x38] sm:$0xff]
          %v895 = vld [vmem:[#allocation2] sm:$0xff]
          %v896 = vld [vmem:[#allocation2 + $0x8] sm:$0xff]
          %v897 = vld [vmem:[#allocation2 + $0x10] sm:$0xff]
          %v898 = vld [vmem:[#allocation2 + $0x18] sm:$0xff]
          %v899 = vld [vmem:[#allocation2 + $0x20] sm:$0xff]
          %v900 = vld [vmem:[#allocation2 + $0x28] sm:$0xff]
          %v901 = vld [vmem:[#allocation2 + $0x30] sm:$0xff]
          %v902 = vld [vmem:[#allocation2 + $0x38] sm:$0xff]
          %904 = vset.pattern.permute.xlu0 0
          %905 = vperm.xlu0 %904, %v887
          %v906 = vpop.permute.xlu0 %905
          %909 = vset.pattern.permute.xlu0 0
          %910 = vperm.xlu0 %909, %v888
          %v911 = vpop.permute.xlu0 %910
          %914 = vset.pattern.permute.xlu0 0
          %915 = vperm.xlu0 %914, %v889
          %v916 = vpop.permute.xlu0 %915
          %919 = vset.pattern.permute.xlu0 0
          %920 = vperm.xlu0 %919, %v890
          %v921 = vpop.permute.xlu0 %920
          %924 = vset.pattern.permute.xlu0 0
          %925 = vperm.xlu0 %924, %v891
          %v926 = vpop.permute.xlu0 %925
          %929 = vset.pattern.permute.xlu0 0
          %930 = vperm.xlu0 %929, %v892
          %v931 = vpop.permute.xlu0 %930
          %934 = vset.pattern.permute.xlu0 0
          %935 = vperm.xlu0 %934, %v893
          %v936 = vpop.permute.xlu0 %935
          %939 = vset.pattern.permute.xlu0 0
          %940 = vperm.xlu0 %939, %v894
          %v941 = vpop.permute.xlu0 %940
          %v943 = vmul.f32 %v906, %v895
          %v944 = vmul.f32 %v911, %v896
          %v945 = vmul.f32 %v916, %v897
          %v946 = vmul.f32 %v921, %v898
          %v947 = vmul.f32 %v926, %v899
          %v948 = vmul.f32 %v931, %v900
          %v949 = vmul.f32 %v936, %v901
          %v950 = vmul.f32 %v941, %v902
          %v951 = vsel %vm874, %v943, -inf
          %952 = vmax.xlane.f32.xlu0 %v951
          %v953 = vpop.xlane.xlu0 %952
          %v954 = vsel %vm874, %v944, -inf
          %955 = vmax.xlane.f32.xlu0 %v954
          %v956 = vpop.xlane.xlu0 %955
          %v957 = vsel %vm874, %v945, -inf
          %958 = vmax.xlane.f32.xlu0 %v957
          %v959 = vpop.xlane.xlu0 %958
          %v960 = vsel %vm874, %v946, -inf
          %961 = vmax.xlane.f32.xlu0 %v960
          %v962 = vpop.xlane.xlu0 %961
          %v963 = vsel %vm874, %v947, -inf
          %964 = vmax.xlane.f32.xlu0 %v963
          %v965 = vpop.xlane.xlu0 %964
          %v966 = vsel %vm874, %v948, -inf
          %967 = vmax.xlane.f32.xlu0 %v966
          %v968 = vpop.xlane.xlu0 %967
          %v969 = vsel %vm874, %v949, -inf
          %970 = vmax.xlane.f32.xlu0 %v969
          %v971 = vpop.xlane.xlu0 %970
          %v972 = vsel %vm874, %v950, -inf
          %973 = vmax.xlane.f32.xlu0 %v972
          %v974 = vpop.xlane.xlu0 %973
          %v975 = vsub.f32 %v943, %v953
          %v976 = vsub.f32 %v944, %v956
          %v977 = vsub.f32 %v945, %v959
          %v978 = vsub.f32 %v946, %v962
          %v979 = vsub.f32 %v947, %v965
          %v980 = vsub.f32 %v948, %v968
          %v981 = vsub.f32 %v949, %v971
          %v982 = vsub.f32 %v950, %v974
          %v983 = vmul.f32 %v975, 1.442695
          %v984 = vpow.pop %v983
          %v985 = vmul.f32 %v976, 1.442695
          %v986 = vpow.pop %v985
          %v987 = vmul.f32 %v977, 1.442695
          %v988 = vpow.pop %v987
          %v989 = vmul.f32 %v978, 1.442695
          %v990 = vpow.pop %v989
          %v991 = vmul.f32 %v979, 1.442695
          %v992 = vpow.pop %v991
          %v993 = vmul.f32 %v980, 1.442695
          %v994 = vpow.pop %v993
          %v995 = vmul.f32 %v981, 1.442695
          %v996 = vpow.pop %v995
          %v997 = vmul.f32 %v982, 1.442695
          %v998 = vpow.pop %v997
          %v999 = vsel %vm874, %v984, 0.0
          %1000 = vadd.xlane.f32.xlu0 %v999
          %v1001 = vpop.xlane.xlu0 %1000
          %v1002 = vsel %vm874, %v986, 0.0
          %1003 = vadd.xlane.f32.xlu0 %v1002
          %v1004 = vpop.xlane.xlu0 %1003
          %v1005 = vsel %vm874, %v988, 0.0
          %1006 = vadd.xlane.f32.xlu0 %v1005
          %v1007 = vpop.xlane.xlu0 %1006
          %v1008 = vsel %vm874, %v990, 0.0
          %1009 = vadd.xlane.f32.xlu0 %v1008
          %v1010 = vpop.xlane.xlu0 %1009
          %v1011 = vsel %vm874, %v992, 0.0
          %1012 = vadd.xlane.f32.xlu0 %v1011
          %v1013 = vpop.xlane.xlu0 %1012
          %v1014 = vsel %vm874, %v994, 0.0
          %1015 = vadd.xlane.f32.xlu0 %v1014
          %v1016 = vpop.xlane.xlu0 %1015
          %v1017 = vsel %vm874, %v996, 0.0
          %1018 = vadd.xlane.f32.xlu0 %v1017
          %v1019 = vpop.xlane.xlu0 %1018
          %v1020 = vsel %vm874, %v998, 0.0
          %1021 = vadd.xlane.f32.xlu0 %v1020
          %v1022 = vpop.xlane.xlu0 %1021
          %v1023 = vlog2.pop %v1001
          %v1024 = vmul.f32 %v1023, 0.6931472
          %v1025 = vlog2.pop %v1004
          %v1026 = vmul.f32 %v1025, 0.6931472
          %v1027 = vlog2.pop %v1007
          %v1028 = vmul.f32 %v1027, 0.6931472
          %v1029 = vlog2.pop %v1010
          %v1030 = vmul.f32 %v1029, 0.6931472
          %v1031 = vlog2.pop %v1013
          %v1032 = vmul.f32 %v1031, 0.6931472
          %v1033 = vlog2.pop %v1016
          %v1034 = vmul.f32 %v1033, 0.6931472
          %v1035 = vlog2.pop %v1019
          %v1036 = vmul.f32 %v1035, 0.6931472
          %v1037 = vlog2.pop %v1022
          %v1038 = vmul.f32 %v1037, 0.6931472
          %v1039 = vsub.f32 %v975, %v1024
          %v1040 = vsub.f32 %v976, %v1026
          %v1041 = vsub.f32 %v977, %v1028
          %v1042 = vsub.f32 %v978, %v1030
          %v1043 = vsub.f32 %v979, %v1032
          %v1044 = vsub.f32 %v980, %v1034
          %v1045 = vsub.f32 %v981, %v1036
          %v1046 = vsub.f32 %v982, %v1038
          %1047 = vst.msk [vmem:[%s404] sm:$0xff] %vm874, %v1039
          %1048 = vst.msk [vmem:[%s404 + $0x8] sm:$0xff] %vm874, %v1040
          %1049 = vst.msk [vmem:[%s404 + $0x10] sm:$0xff] %vm874, %v1041
          %1050 = vst.msk [vmem:[%s404 + $0x18] sm:$0xff] %vm874, %v1042
          %1051 = vst.msk [vmem:[%s404 + $0x20] sm:$0xff] %vm874, %v1043
          %1052 = vst.msk [vmem:[%s404 + $0x28] sm:$0xff] %vm874, %v1044
          %1053 = vst.msk [vmem:[%s404 + $0x30] sm:$0xff] %vm874, %v1045
          %1054 = vst.msk [vmem:[%s404 + $0x38] sm:$0xff] %vm874, %v1046
        $region93: #{gcn_forward.3} parent=80 // pred_fallthru
          _
        %s1055 = smul.u32 8, %s21
        %p1056 = scmp.lt.s32.totalorder %s1055, 31
        %s1057 = scalar_select %p1056, %s1055, 31
        %s1058 = smul.addr %s1057, 8
        %s1059 = scalar_lea.vmem %s6, %s1058
        // Predicated region
        $region94: #{gcn_forward.3} parent=80 // pred_check
          %p1060 = pneg %p195
        $region95: #{gcn_forward.3} parent=80 // pred_check_branch
          %1062 = sbr.rel (%p1060) target = $region97
        $region96: #{gcn_forward.3} parent=80 // pred_region
          %s1063 = smul.u32 8, %s21
        $region97: #{gcn_forward.3} parent=80 // pred_fallthru
          _
      $region81: #{gcn_forward.3} parent=5 // pred_fallthru
        _
      %p1064 = scmp.le.s32.totalorder 2, %s12
      // Predicated region
      $region98: #{gcn_forward.3} parent=5 // pred_check
        %p1065 = pneg %p1064
      $region99: #{gcn_forward.3} parent=5 // pred_check_branch
        %1067 = sbr.rel (%p1065) target = $region101
      $region100: #{gcn_forward.3} parent=5 // pred_region
        %s1068 = ssub.s32 %s12, 2
        // Predicated region
        $region102: #{gcn_forward.3} parent=100 // pred_check
          %p1069 = pneg %p201
        $region103: #{gcn_forward.3} parent=100 // pred_check_branch
          %1071 = sbr.rel (%p1069) target = $region105
        $region104: #{gcn_forward.3} parent=100 // pred_region
          %s1072 = smul.u32 8, %s23
          %p1073 = scmp.lt.s32.totalorder %s1072, 31
          %s1074 = scalar_select %p1073, %s1072, 31
          %s1075 = smul.addr %s1074, 8
          %s1076 = scalar_lea.vmem %s6, %s1075
        $region105: #{gcn_forward.3} parent=100 // pred_fallthru
          _
      $region101: #{gcn_forward.3} parent=5 // pred_fallthru
        _
    $region6: #{gcn_forward.3} parent=1 // loop_footer
      %s16 = sadd.s32 1, %s12
    $region7: #{gcn_forward.3} parent=1 // loop_footer_branch
      %11 = sbr.rel target = $region3
    $region8: #{gcn_forward.3} parent=1 // loop_exit
      _

// kernel: gcn_forward.2
$region0: #{gcn_forward.2}
  #allocation0 [shape = 'u32[]', space=smem, size = 0x4, offset = 0x4, fixed_abs, tag = 'smem constant byte address 0x4 - core index']
  #allocation1 [shape = 'u32[144,128]{1,0:T(1,128)}', space=vmem, size = 0x12000, scoped, tag = 'internal scratch']
  #allocation2 [shape = 'f32[64,32]{1,0:T(8,128)}', space=vmem, size = 0x8000, scoped, tag = 'scratch operand']
  %s0 = inlined_call_operand.vmem [shape: f32[256,16], index: 0, kind: input, shape index: {}]
  %s1 = inlined_call_operand.vmem [shape: bf16[256,256], index: 1, kind: input, shape index: {}]
  %s2 = inlined_call_operand.vmem [shape: f32[256,1], index: 2, kind: input, shape index: {}, may-alias: {2,3}]
  %s3 = inlined_call_operand.vmem [shape: f32[256,1], index: 3, kind: input, shape index: {}, may-alias: {2,3}]
  %s4 = inlined_call_operand.vmem [shape: f32[16,32], index: 4, kind: input, shape index: {}]
  %s5 = inlined_call_operand.vmem [shape: f32[1,32], index: 5, kind: input, shape index: {}]
  %s6 = inlined_call_operand.vmem [shape: f32[1,32], index: 6, kind: input, shape index: {}]
  %s7 = inlined_call_operand.vmem [shape: f32[1,32], index: 7, kind: input, shape index: {}]
  %s8 = inlined_call_operand.vmem [shape: f32[256,32], index: 8, kind: output, shape index: {}]
  %s9 = sld [smem:[#allocation0]]
  $region114: #{gcn_forward.2} parent=0
    _
  %s11 = ssub.s32 1, %s9
  %s12 = scalar_select 0, %s11, %s9
  $region1: #{gcn_forward.2} parent=0
    #allocation3 [shape = 'u8[32768]{0}', space=vmem, size = 0x8000, scoped, tag = 'input window, operand 1']
    loop: start=0, step=1, limit=10
    $region2: #{gcn_forward.2} parent=1 // loop_pre_header
      _
    $region3: #{gcn_forward.2} parent=1 // loop_header
      %s14 = sphi 0, %s18
      %p15 = scmp.ge.s32.totalorder %s14, 10
      %s21 = sphi 0, %s33
      %s22 = sphi 0, %s29
      %s23 = sphi 0, %s21
      %s24 = sphi 0, %s22
      %s25 = sphi 0, %s23
      %s26 = sphi 0, %s24
      %s36 = sphi 0, %s38
      %s39 = sphi 0, %s36
      %s40 = sphi 0, %s39
      %s56 = sphi 0, %s40
      %s64 = sphi 0, %s66
      %s67 = sphi 0, %s64
      %s68 = sphi 0, %s67
      %s84 = sphi 0, %s68
      %s90 = sphi 0, %s92
      %s93 = sphi 0, %s90
      %s94 = sphi 0, %s93
      %s110 = sphi 0, %s94
      %s116 = sphi 0, %s118
      %s119 = sphi 0, %s116
      %s120 = sphi 0, %s119
      %s136 = sphi 0, %s120
      %s140 = sphi 0, %s140
      %s142 = sphi 0, %s140
      %s143 = sphi 0, %s142
      %s157 = sphi 0, %s143
      %s161 = sphi 0, %s161
      %s163 = sphi 0, %s161
      %s164 = sphi 0, %s163
      %s178 = sphi 0, %s164
      %s182 = sphi 0, %s182
      %s184 = sphi 0, %s182
      %s185 = sphi 0, %s184
      %s199 = sphi 0, %s185
      %s203 = sphi 0, %s203
      %s205 = sphi 0, %s203
      %s206 = sphi 0, %s205
      %s220 = sphi 0, %s206
      %s226 = sphi 0, %s228
      %s229 = sphi 0, %s226
      %s230 = sphi 0, %s229
      %s246 = sphi 0, %s230
    $region4: #{gcn_forward.2} parent=1 // loop_header_branch
      %17 = sbr.rel (%p15) target = $region8
    $region5: #{gcn_forward.2} parent=1 // loop_body
      %s19 = ssub.s32 %s14, 1
      %s20 = ssub.s32 %s14, 2
      %s27 = sadd.s32 1, %s22
      %p28 = scmp.ge.s32.totalorder %s27, 2
      %s29 = scalar_select %p28, 0, %s27
      %s30 = sadd.s32 1, %s21
      %s31 = scalar_select %p28, %s30, %s21
      %p32 = scmp.ge.s32.totalorder %s31, 4
      %s33 = scalar_select %p32, 0, %s31
      %s34 = ssub.s32 %s22, %s29
      %p35 = scmp.eq.s32.totalorder %s34, 0
      %s37 = sadd.s32 %s36, 1
      %s38 = scalar_select %p35, %s36, %s37
      %p41 = pneg %p35
      %p42 = scmp.eq.s32.totalorder %s14, 7
      %p43 = por %p41, %p42
      %p44 = scmp.ne.s32.totalorder %s36, %s39
      %p45 = scmp.eq.s32.totalorder %s14, 0
      %p46 = por %p44, %p45
      %p47 = scmp.ne.s32.totalorder %s36, %s39
      %p48 = scmp.eq.s32.totalorder %s19, 7
      %p49 = por %p47, %p48
      %p50 = scmp.ne.s32.totalorder %s39, %s40
      %p51 = scmp.eq.s32.totalorder %s19, 0
      %p52 = por %p50, %p51
      %p53 = scmp.ne.s32.totalorder %s39, %s40
      %p54 = scmp.eq.s32.totalorder %s20, 7
      %p55 = por %p53, %p54
      %p57 = scmp.ne.s32.totalorder %s40, %s56
      %p58 = scmp.eq.s32.totalorder %s20, 0
      %p59 = por %p57, %p58
      %s60 = ssub.s32 %s21, %s33
      %s61 = ssub.s32 %s22, %s29
      %s62 = sor.u32 %s60, %s61
      %p63 = scmp.eq.s32.totalorder %s62, 0
      %s65 = sadd.s32 %s64, 1
      %s66 = scalar_select %p63, %s64, %s65
      %p69 = pneg %p63
      %p70 = scmp.eq.s32.totalorder %s14, 7
      %p71 = por %p69, %p70
      %p72 = scmp.ne.s32.totalorder %s64, %s67
      %p73 = scmp.eq.s32.totalorder %s14, 0
      %p74 = por %p72, %p73
      %p75 = scmp.ne.s32.totalorder %s64, %s67
      %p76 = scmp.eq.s32.totalorder %s19, 7
      %p77 = por %p75, %p76
      %p78 = scmp.ne.s32.totalorder %s67, %s68
      %p79 = scmp.eq.s32.totalorder %s19, 0
      %p80 = por %p78, %p79
      %p81 = scmp.ne.s32.totalorder %s67, %s68
      %p82 = scmp.eq.s32.totalorder %s20, 7
      %p83 = por %p81, %p82
      %p85 = scmp.ne.s32.totalorder %s68, %s84
      %p86 = scmp.eq.s32.totalorder %s20, 0
      %p87 = por %p85, %p86
      %s88 = ssub.s32 %s22, %s29
      %p89 = scmp.eq.s32.totalorder %s88, 0
      %s91 = sadd.s32 %s90, 1
      %s92 = scalar_select %p89, %s90, %s91
      %p95 = pneg %p89
      %p96 = scmp.eq.s32.totalorder %s14, 7
      %p97 = por %p95, %p96
      %p98 = scmp.ne.s32.totalorder %s90, %s93
      %p99 = scmp.eq.s32.totalorder %s14, 0
      %p100 = por %p98, %p99
      %p101 = scmp.ne.s32.totalorder %s90, %s93
      %p102 = scmp.eq.s32.totalorder %s19, 7
      %p103 = por %p101, %p102
      %p104 = scmp.ne.s32.totalorder %s93, %s94
      %p105 = scmp.eq.s32.totalorder %s19, 0
      %p106 = por %p104, %p105
      %p107 = scmp.ne.s32.totalorder %s93, %s94
      %p108 = scmp.eq.s32.totalorder %s20, 7
      %p109 = por %p107, %p108
      %p111 = scmp.ne.s32.totalorder %s94, %s110
      %p112 = scmp.eq.s32.totalorder %s20, 0
      %p113 = por %p111, %p112
      %s114 = ssub.s32 %s21, %s33
      %p115 = scmp.eq.s32.totalorder %s114, 0
      %s117 = sadd.s32 %s116, 1
      %s118 = scalar_select %p115, %s116, %s117
      %p121 = pneg %p115
      %p122 = scmp.eq.s32.totalorder %s14, 7
      %p123 = por %p121, %p122
      %p124 = scmp.ne.s32.totalorder %s116, %s119
      %p125 = scmp.eq.s32.totalorder %s14, 0
      %p126 = por %p124, %p125
      %p127 = scmp.ne.s32.totalorder %s116, %s119
      %p128 = scmp.eq.s32.totalorder %s19, 7
      %p129 = por %p127, %p128
      %p130 = scmp.ne.s32.totalorder %s119, %s120
      %p131 = scmp.eq.s32.totalorder %s19, 0
      %p132 = por %p130, %p131
      %p133 = scmp.ne.s32.totalorder %s119, %s120
      %p134 = scmp.eq.s32.totalorder %s20, 7
      %p135 = por %p133, %p134
      %p137 = scmp.ne.s32.totalorder %s120, %s136
      %p138 = scmp.eq.s32.totalorder %s20, 0
      %p139 = por %p137, %p138
      %s141 = sadd.s32 %s140, 1
      %p144 = scmp.eq.s32.totalorder %s14, 7
      %p145 = scmp.ne.s32.totalorder %s140, %s142
      %p146 = scmp.eq.s32.totalorder %s14, 0
      %p147 = por %p145, %p146
      %p148 = scmp.ne.s32.totalorder %s140, %s142
      %p149 = scmp.eq.s32.totalorder %s19, 7
      %p150 = por %p148, %p149
      %p151 = scmp.ne.s32.totalorder %s142, %s143
      %p152 = scmp.eq.s32.totalorder %s19, 0
      %p153 = por %p151, %p152
      %p154 = scmp.ne.s32.totalorder %s142, %s143
      %p155 = scmp.eq.s32.totalorder %s20, 7
      %p156 = por %p154, %p155
      %p158 = scmp.ne.s32.totalorder %s143, %s157
      %p159 = scmp.eq.s32.totalorder %s20, 0
      %p160 = por %p158, %p159
      %s162 = sadd.s32 %s161, 1
      %p165 = scmp.eq.s32.totalorder %s14, 7
      %p166 = scmp.ne.s32.totalorder %s161, %s163
      %p167 = scmp.eq.s32.totalorder %s14, 0
      %p168 = por %p166, %p167
      %p169 = scmp.ne.s32.totalorder %s161, %s163
      %p170 = scmp.eq.s32.totalorder %s19, 7
      %p171 = por %p169, %p170
      %p172 = scmp.ne.s32.totalorder %s163, %s164
      %p173 = scmp.eq.s32.totalorder %s19, 0
      %p174 = por %p172, %p173
      %p175 = scmp.ne.s32.totalorder %s163, %s164
      %p176 = scmp.eq.s32.totalorder %s20, 7
      %p177 = por %p175, %p176
      %p179 = scmp.ne.s32.totalorder %s164, %s178
      %p180 = scmp.eq.s32.totalorder %s20, 0
      %p181 = por %p179, %p180
      %s183 = sadd.s32 %s182, 1
      %p186 = scmp.eq.s32.totalorder %s14, 7
      %p187 = scmp.ne.s32.totalorder %s182, %s184
      %p188 = scmp.eq.s32.totalorder %s14, 0
      %p189 = por %p187, %p188
      %p190 = scmp.ne.s32.totalorder %s182, %s184
      %p191 = scmp.eq.s32.totalorder %s19, 7
      %p192 = por %p190, %p191
      %p193 = scmp.ne.s32.totalorder %s184, %s185
      %p194 = scmp.eq.s32.totalorder %s19, 0
      %p195 = por %p193, %p194
      %p196 = scmp.ne.s32.totalorder %s184, %s185
      %p197 = scmp.eq.s32.totalorder %s20, 7
      %p198 = por %p196, %p197
      %p200 = scmp.ne.s32.totalorder %s185, %s199
      %p201 = scmp.eq.s32.totalorder %s20, 0
      %p202 = por %p200, %p201
      %s204 = sadd.s32 %s203, 1
      %p207 = scmp.eq.s32.totalorder %s14, 7
      %p208 = scmp.ne.s32.totalorder %s203, %s205
      %p209 = scmp.eq.s32.totalorder %s14, 0
      %p210 = por %p208, %p209
      %p211 = scmp.ne.s32.totalorder %s203, %s205
      %p212 = scmp.eq.s32.totalorder %s19, 7
      %p213 = por %p211, %p212
      %p214 = scmp.ne.s32.totalorder %s205, %s206
      %p215 = scmp.eq.s32.totalorder %s19, 0
      %p216 = por %p214, %p215
      %p217 = scmp.ne.s32.totalorder %s205, %s206
      %p218 = scmp.eq.s32.totalorder %s20, 7
      %p219 = por %p217, %p218
      %p221 = scmp.ne.s32.totalorder %s206, %s220
      %p222 = scmp.eq.s32.totalorder %s20, 0
      %p223 = por %p221, %p222
      %s224 = ssub.s32 %s21, %s33
      %p225 = scmp.eq.s32.totalorder %s224, 0
      %s227 = sadd.s32 %s226, 1
      %s228 = scalar_select %p225, %s226, %s227
      %p231 = pneg %p225
      %p232 = scmp.eq.s32.totalorder %s14, 7
      %p233 = por %p231, %p232
      %p234 = scmp.ne.s32.totalorder %s226, %s229
      %p235 = scmp.eq.s32.totalorder %s14, 0
      %p236 = por %p234, %p235
      %p237 = scmp.ne.s32.totalorder %s226, %s229
      %p238 = scmp.eq.s32.totalorder %s19, 7
      %p239 = por %p237, %p238
      %p240 = scmp.ne.s32.totalorder %s229, %s230
      %p241 = scmp.eq.s32.totalorder %s19, 0
      %p242 = por %p240, %p241
      %p243 = scmp.ne.s32.totalorder %s229, %s230
      %p244 = scmp.eq.s32.totalorder %s20, 7
      %p245 = por %p243, %p244
      %p247 = scmp.ne.s32.totalorder %s230, %s246
      %p248 = scmp.eq.s32.totalorder %s20, 0
      %p249 = por %p247, %p248
      %p250 = scmp.le.s32.totalorder 1, %s14
      %p251 = scmp.lt.s32.totalorder %s14, 9
      %p252 = pnand %p250, %p251
      %p253 = pneg %p252
      // Predicated region
      $region9: #{gcn_forward.2} parent=5 // pred_check
        _
      $region10: #{gcn_forward.2} parent=5 // pred_check_branch
        %255 = sbr.rel (%p252) target = $region12
      $region11: #{gcn_forward.2} parent=5 // pred_region
        %s256 = ssub.s32 %s14, 1
        // Predicated region
        $region13: #{gcn_forward.2} parent=11 // pred_check
          %p257 = pneg %p153
        $region14: #{gcn_forward.2} parent=11 // pred_check_branch
          %259 = sbr.rel (%p257) target = $region16
        $region15: #{gcn_forward.2} parent=11 // pred_region
          _
        $region16: #{gcn_forward.2} parent=11 // pred_fallthru
          _
        // Predicated region
        $region17: #{gcn_forward.2} parent=11 // pred_check
          %p260 = pneg %p174
        $region18: #{gcn_forward.2} parent=11 // pred_check_branch
          %262 = sbr.rel (%p260) target = $region20
        $region19: #{gcn_forward.2} parent=11 // pred_region
          _
        $region20: #{gcn_forward.2} parent=11 // pred_fallthru
          _
        // Predicated region
        $region21: #{gcn_forward.2} parent=11 // pred_check
          %p263 = pneg %p195
        $region22: #{gcn_forward.2} parent=11 // pred_check_branch
          %265 = sbr.rel (%p263) target = $region24
        $region23: #{gcn_forward.2} parent=11 // pred_region
          _
        $region24: #{gcn_forward.2} parent=11 // pred_fallthru
          _
        // Predicated region
        $region25: #{gcn_forward.2} parent=11 // pred_check
          %p266 = pneg %p216
        $region26: #{gcn_forward.2} parent=11 // pred_check_branch
          %268 = sbr.rel (%p266) target = $region28
        $region27: #{gcn_forward.2} parent=11 // pred_region
          _
        $region28: #{gcn_forward.2} parent=11 // pred_fallthru
          _
      $region12: #{gcn_forward.2} parent=5 // pred_fallthru
        _
      %p269 = scmp.lt.s32.totalorder %s14, 8
      // Predicated region
      $region29: #{gcn_forward.2} parent=5 // pred_check
        %p270 = pneg %p269
      $region30: #{gcn_forward.2} parent=5 // pred_check_branch
        %272 = sbr.rel (%p270) target = $region32
      $region31: #{gcn_forward.2} parent=5 // pred_region
        // Predicated region
        $region33: #{gcn_forward.2} parent=31 // pred_check
          %p273 = pneg %p46
        $region34: #{gcn_forward.2} parent=31 // pred_check_branch
          %275 = sbr.rel (%p273) target = $region36
        $region35: #{gcn_forward.2} parent=31 // pred_region
          %s276 = smul.u32 16, %s22
          %p277 = scmp.lt.s32.totalorder %s276, 31
          %s278 = scalar_select %p277, %s276, 31
          %s279 = smul.addr %s278, 8
          %s280 = scalar_lea.vmem %s0, %s279
          %s281 = smul.u32 16, %s22
        $region36: #{gcn_forward.2} parent=31 // pred_fallthru
          _
        // Predicated region
        $region37: #{gcn_forward.2} parent=31 // pred_check
          %p282 = pneg %p74
        $region38: #{gcn_forward.2} parent=31 // pred_check_branch
          %284 = sbr.rel (%p282) target = $region40
        $region39: #{gcn_forward.2} parent=31 // pred_region
          %s285 = sand.u32 %s64, 1
          %s286 = sand.u32 %s64, 1
          %s287 = smul.addr %s286, 32
          %s288 = scalar_lea.vmem [#allocation3], %s287
          %s289 = smul.u32 8, %s21
          %s290 = smul.addr %s289, 2
          %s291 = sadd.s32 %s22, %s290
          %s292 = smul.addr %s291, 4
          %s293 = scalar_lea.vmem %s1, %s292
          // Predicated region
          $region41: #{gcn_forward.2} parent=39 // pred_check
            _
          $region42: #{gcn_forward.2} parent=39 // pred_check_branch
            %295 = sbr.rel (0) target = $region44
          $region43: #{gcn_forward.2} parent=39 // pred_region
            // Predicated region
            $region45: #{gcn_forward.2} parent=43 // pred_check
              _
            $region46: #{gcn_forward.2} parent=43 // pred_check_branch
              %297 = sbr.rel target = $region48
            $region47: #{gcn_forward.2} parent=43 // pred_region
              // Predicated region
              $region60: #{gcn_forward.2} parent=47 // pred_check
                _
              $region61: #{gcn_forward.2} parent=47 // pred_check_branch
                %326 = sbr.rel (0) target = $region63
              $region62: #{gcn_forward.2} parent=47 // pred_region
                loop: start=0, step=1, limit=1
                $region64: #{gcn_forward.2} parent=62 // loop_pre_header
                  _
                $region65: #{gcn_forward.2} parent=62 // loop_header
                  %s328 = sphi 0, %s332
                  %p329 = scmp.ge.s32.totalorder %s328, 1
                  %s333 = sphi %s293, %s293
                  %s334 = sphi %s288, %s288
                $region66: #{gcn_forward.2} parent=62 // loop_header_branch
                  %331 = sbr.rel (%p329) target = $region70
                $region67: #{gcn_forward.2} parent=62 // loop_body
                  _
                $region68: #{gcn_forward.2} parent=62 // loop_footer
                  %s332 = sadd.s32 1, %s328
                $region69: #{gcn_forward.2} parent=62 // loop_footer_branch
                  %327 = sbr.rel target = $region65
                $region70: #{gcn_forward.2} parent=62 // loop_exit
                  _
                loop: start=0, step=1, limit=1
                $region71: #{gcn_forward.2} parent=62 // loop_pre_header
                  _
                $region72: #{gcn_forward.2} parent=62 // loop_header
                  %s337 = sphi 0, %s341
                  %p338 = scmp.ge.s32.totalorder %s337, 1
                  %s342 = sphi %s293, %s293
                  %s343 = sphi %s288, %s288
                $region73: #{gcn_forward.2} parent=62 // loop_header_branch
                  %340 = sbr.rel (%p338) target = $region77
                $region74: #{gcn_forward.2} parent=62 // loop_body
                  %v344 = vld [vmem:[%s342] sm:$0xf]
                  %345 = vst [vmem:[%s343] sm:$0xf] %v344
                  %v346 = vld [vmem:[%s342 + $0x8] sm:$0xf]
                  %347 = vst [vmem:[%s343 + $0x4] sm:$0xf] %v346
                  %v348 = vld [vmem:[%s342 + $0x10] sm:$0xf]
                  %349 = vst [vmem:[%s343 + $0x8] sm:$0xf] %v348
                  %v350 = vld [vmem:[%s342 + $0x18] sm:$0xf]
                  %351 = vst [vmem:[%s343 + $0xc] sm:$0xf] %v350
                  %v352 = vld [vmem:[%s342 + $0x20] sm:$0xf]
                  %353 = vst [vmem:[%s343 + $0x10] sm:$0xf] %v352
                  %v354 = vld [vmem:[%s342 + $0x28] sm:$0xf]
                  %355 = vst [vmem:[%s343 + $0x14] sm:$0xf] %v354
                  %v356 = vld [vmem:[%s342 + $0x30] sm:$0xf]
                  %357 = vst [vmem:[%s343 + $0x18] sm:$0xf] %v356
                  %v358 = vld [vmem:[%s342 + $0x38] sm:$0xf]
                  %359 = vst [vmem:[%s343 + $0x1c] sm:$0xf] %v358
                $region75: #{gcn_forward.2} parent=62 // loop_footer
                  %s341 = sadd.s32 1, %s337
                $region76: #{gcn_forward.2} parent=62 // loop_footer_branch
                  %336 = sbr.rel target = $region72
                $region77: #{gcn_forward.2} parent=62 // loop_exit
                  _
              $region63: #{gcn_forward.2} parent=47 // pred_fallthru
                _
            $region48: #{gcn_forward.2} parent=43 // pred_fallthru
              _
            // Predicated region
            $region49: #{gcn_forward.2} parent=43 // pred_check
              _
            $region50: #{gcn_forward.2} parent=43 // pred_check_branch
              %299 = sbr.rel (0) target = $region52
            $region51: #{gcn_forward.2} parent=43 // pred_region
              loop: start=0, step=1, limit=1
              $region53: #{gcn_forward.2} parent=51 // loop_pre_header
                _
              $region54: #{gcn_forward.2} parent=51 // loop_header
                %s302 = sphi 0, %s306
                %p303 = scmp.ge.s32.totalorder %s302, 1
                %s307 = sphi %s293, %s293
                %s308 = sphi %s288, %s288
              $region55: #{gcn_forward.2} parent=51 // loop_header_branch
                %305 = sbr.rel (%p303) target = $region59
              $region56: #{gcn_forward.2} parent=51 // loop_body
                %v309 = vld [vmem:[%s307] sm:$0xf]
                %310 = vst [vmem:[%s308] sm:$0xf] %v309
                %v311 = vld [vmem:[%s307 + $0x8] sm:$0xf]
                %312 = vst [vmem:[%s308 + $0x4] sm:$0xf] %v311
                %v313 = vld [vmem:[%s307 + $0x10] sm:$0xf]
                %314 = vst [vmem:[%s308 + $0x8] sm:$0xf] %v313
                %v315 = vld [vmem:[%s307 + $0x18] sm:$0xf]
                %316 = vst [vmem:[%s308 + $0xc] sm:$0xf] %v315
                %v317 = vld [vmem:[%s307 + $0x20] sm:$0xf]
                %318 = vst [vmem:[%s308 + $0x10] sm:$0xf] %v317
                %v319 = vld [vmem:[%s307 + $0x28] sm:$0xf]
                %320 = vst [vmem:[%s308 + $0x14] sm:$0xf] %v319
                %v321 = vld [vmem:[%s307 + $0x30] sm:$0xf]
                %322 = vst [vmem:[%s308 + $0x18] sm:$0xf] %v321
                %v323 = vld [vmem:[%s307 + $0x38] sm:$0xf]
                %324 = vst [vmem:[%s308 + $0x1c] sm:$0xf] %v323
              $region57: #{gcn_forward.2} parent=51 // loop_footer
                %s306 = sadd.s32 1, %s302
              $region58: #{gcn_forward.2} parent=51 // loop_footer_branch
                %301 = sbr.rel target = $region54
              $region59: #{gcn_forward.2} parent=51 // loop_exit
                _
            $region52: #{gcn_forward.2} parent=43 // pred_fallthru
              _
          $region44: #{gcn_forward.2} parent=39 // pred_fallthru
            _
          %360 = vnop
        $region40: #{gcn_forward.2} parent=31 // pred_fallthru
          _
        // Predicated region
        $region78: #{gcn_forward.2} parent=31 // pred_check
          %p361 = pneg %p100
        $region79: #{gcn_forward.2} parent=31 // pred_check_branch
          %363 = sbr.rel (%p361) target = $region81
        $region80: #{gcn_forward.2} parent=31 // pred_region
          %s364 = smul.u32 16, %s22
          %p365 = scmp.lt.s32.totalorder %s364, 31
          %s366 = scalar_select %p365, %s364, 31
          %s367 = smul.addr %s366, 8
          %s368 = scalar_lea.vmem %s2, %s367
          %s369 = smul.u32 16, %s22
        $region81: #{gcn_forward.2} parent=31 // pred_fallthru
          _
        // Predicated region
        $region82: #{gcn_forward.2} parent=31 // pred_check
          %p370 = pneg %p126
        $region83: #{gcn_forward.2} parent=31 // pred_check_branch
          %372 = sbr.rel (%p370) target = $region85
        $region84: #{gcn_forward.2} parent=31 // pred_region
          %s373 = smul.u32 8, %s21
          %p374 = scmp.lt.s32.totalorder %s373, 31
          %s375 = scalar_select %p374, %s373, 31
          %s376 = smul.addr %s375, 8
          %s377 = scalar_lea.vmem %s3, %s376
          %s378 = smul.u32 8, %s21
        $region85: #{gcn_forward.2} parent=31 // pred_fallthru
          _
      $region32: #{gcn_forward.2} parent=5 // pred_fallthru
        _
      %p379 = scmp.le.s32.totalorder 1, %s14
      %p380 = scmp.lt.s32.totalorder %s14, 9
      %p381 = pnand %p379, %p380
      %p382 = pneg %p381
      // Predicated region
      $region86: #{gcn_forward.2} parent=5 // pred_check
        _
      $region87: #{gcn_forward.2} parent=5 // pred_check_branch
        %384 = sbr.rel (%p381) target = $region89
      $region88: #{gcn_forward.2} parent=5 // pred_region
        %s385 = ssub.s32 %s14, 1
        %s386 = sand.u32 %s67, 1
        %s387 = sand.u32 %s67, 1
        %s388 = smul.addr %s387, 32
        %s389 = scalar_lea.vmem [#allocation3], %s388
        // Predicated region
        $region90: #{gcn_forward.2} parent=88 // pred_check
          %p390 = pneg %p80
        $region91: #{gcn_forward.2} parent=88 // pred_check_branch
          %392 = sbr.rel (%p390) target = $region93
        $region92: #{gcn_forward.2} parent=88 // pred_region
          _
        $region93: #{gcn_forward.2} parent=88 // pred_fallthru
          _
        %s393 = smul.u32 16, %s24
        %p394 = scmp.lt.s32.totalorder %s393, 31
        %s395 = scalar_select %p394, %s393, 31
        %s396 = smul.addr %s395, 8
        %s397 = scalar_lea.vmem %s0, %s396
        %p398 = pneg %p52
        %p399 = pneg %p49
        %s400 = sand.u32 %s67, 1
        %s401 = sand.u32 %s67, 1
        %s402 = smul.addr %s401, 32
        %s403 = scalar_lea.vmem [#allocation3], %s402
        %p404 = pneg %p80
        %p405 = pneg %p77
        %s406 = smul.u32 16, %s24
        %p407 = scmp.lt.s32.totalorder %s406, 31
        %s408 = scalar_select %p407, %s406, 31
        %s409 = smul.addr %s408, 8
        %s410 = scalar_lea.vmem %s2, %s409
        %p411 = pneg %p106
        %p412 = pneg %p103
        %s413 = smul.u32 8, %s23
        %p414 = scmp.lt.s32.totalorder %s413, 31
        %s415 = scalar_select %p414, %s413, 31
        %s416 = smul.addr %s415, 8
        %s417 = scalar_lea.vmem %s3, %s416
        %p418 = pneg %p132
        %p419 = pneg %p129
        %p420 = pneg %p153
        %p421 = pneg %p150
        %p422 = pneg %p174
        %p423 = pneg %p171
        %p424 = pneg %p195
        %p425 = pneg %p192
        %p426 = pneg %p216
        %p427 = pneg %p213
        %p428 = pneg %p242
        %p429 = pneg %p239
        %s430 = smul.u32 8, %s23
        %p431 = scmp.lt.s32.totalorder %s430, 31
        %s432 = scalar_select %p431, %s430, 31
        %s433 = smul.addr %s432, 8
        %s434 = scalar_lea.vmem %s8, %s433
        %s435 = smul.u32 16, %s24
        %p436 = scmp.lt.s32.totalorder %s435, 31
        %s437 = scalar_select %p436, %s435, 31
        %s438 = smul.addr %s437, 8
        %s439 = scalar_lea.vmem %s0, %s438
        %s440 = smul.u32 16, %s24
        %s441 = smul.u32 8, %s23
        %s442 = smul.u32 16, %s24
        %p443 = scmp.lt.s32.totalorder %s442, 31
        %s444 = scalar_select %p443, %s442, 31
        %s445 = smul.addr %s444, 8
        %s446 = scalar_lea.vmem %s2, %s445
        %s447 = smul.u32 16, %s24
        %s448 = smul.u32 8, %s23
        %p449 = scmp.lt.s32.totalorder %s448, 31
        %s450 = scalar_select %p449, %s448, 31
        %s451 = smul.addr %s450, 8
        %s452 = scalar_lea.vmem %s3, %s451
        %s453 = smul.u32 8, %s23
        %s454 = smul.u32 8, %s23
        %p455 = scmp.lt.s32.totalorder %s454, 31
        %s456 = scalar_select %p455, %s454, 31
        %s457 = smul.addr %s456, 8
        %s458 = scalar_lea.vmem %s8, %s457
        %s459 = smul.u32 8, %s23
        %p461 = scmp.eq.s32.totalorder %s24, 0
        // Predicated region
        $region94: #{gcn_forward.2} parent=88 // pred_check
          %p462 = pneg %p461
        $region95: #{gcn_forward.2} parent=88 // pred_check_branch
          %464 = sbr.rel (%p462) target = $region97
        $region96: #{gcn_forward.2} parent=88 // pred_region
          %vm465 = vcmask 261120
          %466 = vst.msk [vmem:[#allocation2] sm:$0xff] %vm465, 0.0
          %467 = vst.msk [vmem:[#allocation2 + $0x8] sm:$0xff] %vm465, 0.0
          %468 = vst.msk [vmem:[#allocation2 + $0x10] sm:$0xff] %vm465, 0.0
          %469 = vst.msk [vmem:[#allocation2 + $0x18] sm:$0xff] %vm465, 0.0
          %470 = vst.msk [vmem:[#allocation2 + $0x20] sm:$0xff] %vm465, 0.0
          %471 = vst.msk [vmem:[#allocation2 + $0x28] sm:$0xff] %vm465, 0.0
          %472 = vst.msk [vmem:[#allocation2 + $0x30] sm:$0xff] %vm465, 0.0
          %473 = vst.msk [vmem:[#allocation2 + $0x38] sm:$0xff] %vm465, 0.0
        $region97: #{gcn_forward.2} parent=88 // pred_fallthru
          _
        %v474 = vld [vmem:[%s439] sm:$0xff]
        %v475 = vld [vmem:[%s439 + $0x8] sm:$0xff]
        %v476 = vld [vmem:[%s439 + $0x10] sm:$0xff]
        %v477 = vld [vmem:[%s439 + $0x18] sm:$0xff]
        %v478 = vld [vmem:[%s439 + $0x20] sm:$0xff]
        %v479 = vld [vmem:[%s439 + $0x28] sm:$0xff]
        %v480 = vld [vmem:[%s439 + $0x30] sm:$0xff]
        %v481 = vld [vmem:[%s439 + $0x38] sm:$0xff]
        %v482 = vld [vmem:[%s439 + $0x40] sm:$0xff]
        %v483 = vld [vmem:[%s439 + $0x48] sm:$0xff]
        %v484 = vld [vmem:[%s439 + $0x50] sm:$0xff]
        %v485 = vld [vmem:[%s439 + $0x58] sm:$0xff]
        %v486 = vld [vmem:[%s439 + $0x60] sm:$0xff]
        %v487 = vld [vmem:[%s439 + $0x68] sm:$0xff]
        %v488 = vld [vmem:[%s439 + $0x70] sm:$0xff]
        %v489 = vld [vmem:[%s439 + $0x78] sm:$0xff]
        %v490 = vld [vmem:[%s4] sm:$0xff]
        %v491 = vld [vmem:[%s4 + $0x8] sm:$0xff]
        %v492 = vld [vmem:[%s5] sm:$0x1]
        %v494 = vlaneseq
        %v495 = vshrl.u32 %v494, 7
        %v496 = vsub.s32 0, %v495
        %v497 = vrot.slane %v492, %v496
        %vm499 = vcmask 130048
        %v501 = vsel %vm499, %v474, 0
        %v504 = vsel %vm499, %v475, 0
        %v507 = vsel %vm499, %v476, 0
        %v510 = vsel %vm499, %v477, 0
        %v513 = vsel %vm499, %v478, 0
        %v516 = vsel %vm499, %v479, 0
        %v519 = vsel %vm499, %v480, 0
        %v522 = vsel %vm499, %v481, 0
        %v525 = vsel %vm499, %v482, 0
        %v528 = vsel %vm499, %v483, 0
        %v531 = vsel %vm499, %v484, 0
        %v534 = vsel %vm499, %v485, 0
        %v537 = vsel %vm499, %v486, 0
        %v540 = vsel %vm499, %v487, 0
        %v543 = vsel %vm499, %v488, 0
        %v546 = vsel %vm499, %v489, 0
        %548 = vmatprep.subr.mxu0 0.0
        %549 = vmatpush1.msra.mxu0 %v490
        %550 = vmatprep.subr.mxu0 0.0
        %551 = vmatpush1.msra.mxu0 %v491
        %552 = vmatprep.subr.mxu0 0.0
        %553 = vmatpush1.msra.mxu0 0.0
        %554 = vmatprep.subr.mxu0 0.0
        %555 = vmatpush1.msra.mxu0 0.0
        %556 = vmatprep.subr.mxu0 0.0
        %557 = vmatpush1.msra.mxu0 0.0
        %558 = vmatprep.subr.mxu0 0.0
        %559 = vmatpush1.msra.mxu0 0.0
        %560 = vmatprep.subr.mxu0 0.0
        %561 = vmatpush1.msra.mxu0 0.0
        %562 = vmatprep.subr.mxu0 0.0
        %563 = vmatpush1.msra.mxu0 0.0
        %564 = vmatprep.subr.mxu0 0.0
        %565 = vmatpush1.msra.mxu0 0.0
        %566 = vmatprep.subr.mxu0 0.0
        %567 = vmatpush1.msra.mxu0 0.0
        %568 = vmatprep.subr.mxu0 0.0
        %569 = vmatpush1.msra.mxu0 0.0
        %570 = vmatprep.subr.mxu0 0.0
        %571 = vmatpush1.msra.mxu0 0.0
        %572 = vmatprep.subr.mxu0 0.0
        %573 = vmatpush1.msra.mxu0 0.0
        %574 = vmatprep.subr.mxu0 0.0
        %575 = vmatpush1.msra.mxu0 0.0
        %576 = vmatprep.subr.mxu0 0.0
        %577 = vmatpush1.msra.mxu0 0.0
        %578 = vmatprep.subr.mxu0 0.0
        %579 = vmatpush1.msra.mxu0 0.0
        %580 = vmatprep.subr.mxu0 0.0
        %581 = vmatpush1.msra.mxu0 0.0
        %582 = vmatprep.subr.mxu0 0.0
        %583 = vmatpush1.msra.mxu0 0.0
        %584 = vmatprep.subr.mxu0 0.0
        %585 = vmatpush1.msra.mxu0 0.0
        %586 = vmatprep.subr.mxu0 0.0
        %587 = vmatpush1.msra.mxu0 0.0
        %588 = vmatprep.subr.mxu0 0.0
        %589 = vmatpush1.msra.mxu0 0.0
        %590 = vmatprep.subr.mxu0 0.0
        %591 = vmatpush1.msra.mxu0 0.0
        %592 = vmatprep.subr.mxu0 0.0
        %593 = vmatpush1.msra.mxu0 0.0
        %594 = vmatprep.subr.mxu0 0.0
        %595 = vmatpush1.msra.mxu0 0.0
        %596 = vmatprep.subr.mxu0 0.0
        %597 = vmatpush1.msra.mxu0 0.0
        %598 = vmatprep.subr.mxu0 0.0
        %599 = vmatpush1.msra.mxu0 0.0
        %600 = vmatprep.subr.mxu0 0.0
        %601 = vmatpush1.msra.mxu0 0.0
        %602 = vmatprep.subr.mxu0 0.0
        %603 = vmatpush1.msra.mxu0 0.0
        %604 = vmatprep.subr.mxu0 0.0
        %605 = vmatpush1.msra.mxu0 0.0
        %606 = vmatprep.subr.mxu0 0.0
        %607 = vmatpush1.msra.mxu0 0.0
        %608 = vmatprep.subr.mxu0 0.0
        %609 = vmatpush1.msra.mxu0 0.0
        %610 = vmatprep.subr.mxu0 0.0
        %611 = vmatpush1.msra.mxu0 0.0
        %612 = vmatprep.mubr.f32.mxu0 0.0
        %613 = vmatmul.mubr.f32.gmra.mrb[0].mxu0 %v501
        %v614 = vpop.f32.mrb[0].mxu0
        %v615 = vadd.f32 %v497, %v614
        %v616 = vpop.f32.mrb[0].mxu0
        %617 = vmatprep.mubr.f32.mxu0 0.0
        %618 = vmatmul.mubr.f32.gmra.mrb[0].mxu0 %v504
        %v619 = vpop.f32.mrb[0].mxu0
        %v620 = vadd.f32 %v497, %v619
        %v621 = vpop.f32.mrb[0].mxu0
        %622 = vmatprep.mubr.f32.mxu0 0.0
        %623 = vmatmul.mubr.f32.gmra.mrb[0].mxu0 %v507
        %v624 = vpop.f32.mrb[0].mxu0
        %v625 = vadd.f32 %v497, %v624
        %v626 = vpop.f32.mrb[0].mxu0
        %627 = vmatprep.mubr.f32.mxu0 0.0
        %628 = vmatmul.mubr.f32.gmra.mrb[0].mxu0 %v510
        %v629 = vpop.f32.mrb[0].mxu0
        %v630 = vadd.f32 %v497, %v629
        %v631 = vpop.f32.mrb[0].mxu0
        %632 = vmatprep.mubr.f32.mxu0 0.0
        %633 = vmatmul.mubr.f32.gmra.mrb[0].mxu0 %v513
        %v634 = vpop.f32.mrb[0].mxu0
        %v635 = vadd.f32 %v497, %v634
        %v636 = vpop.f32.mrb[0].mxu0
        %637 = vmatprep.mubr.f32.mxu0 0.0
        %638 = vmatmul.mubr.f32.gmra.mrb[0].mxu0 %v516
        %v639 = vpop.f32.mrb[0].mxu0
        %v640 = vadd.f32 %v497, %v639
        %v641 = vpop.f32.mrb[0].mxu0
        %642 = vmatprep.mubr.f32.mxu0 0.0
        %643 = vmatmul.mubr.f32.gmra.mrb[0].mxu0 %v519
        %v644 = vpop.f32.mrb[0].mxu0
        %v645 = vadd.f32 %v497, %v644
        %v646 = vpop.f32.mrb[0].mxu0
        %647 = vmatprep.mubr.f32.mxu0 0.0
        %648 = vmatmul.mubr.f32.gmra.mrb[0].mxu0 %v522
        %v649 = vpop.f32.mrb[0].mxu0
        %v650 = vadd.f32 %v497, %v649
        %v651 = vpop.f32.mrb[0].mxu0
        %652 = vmatprep.mubr.f32.mxu0 0.0
        %653 = vmatmul.mubr.f32.gmra.mrb[0].mxu0 %v525
        %v654 = vpop.f32.mrb[0].mxu0
        %v655 = vadd.f32 %v497, %v654
        %v656 = vpop.f32.mrb[0].mxu0
        %657 = vmatprep.mubr.f32.mxu0 0.0
        %658 = vmatmul.mubr.f32.gmra.mrb[0].mxu0 %v528
        %v659 = vpop.f32.mrb[0].mxu0
        %v660 = vadd.f32 %v497, %v659
        %v661 = vpop.f32.mrb[0].mxu0
        %662 = vmatprep.mubr.f32.mxu0 0.0
        %663 = vmatmul.mubr.f32.gmra.mrb[0].mxu0 %v531
        %v664 = vpop.f32.mrb[0].mxu0
        %v665 = vadd.f32 %v497, %v664
        %v666 = vpop.f32.mrb[0].mxu0
        %667 = vmatprep.mubr.f32.mxu0 0.0
        %668 = vmatmul.mubr.f32.gmra.mrb[0].mxu0 %v534
        %v669 = vpop.f32.mrb[0].mxu0
        %v670 = vadd.f32 %v497, %v669
        %v671 = vpop.f32.mrb[0].mxu0
        %672 = vmatprep.mubr.f32.mxu0 0.0
        %673 = vmatmul.mubr.f32.gmra.mrb[0].mxu0 %v537
        %v674 = vpop.f32.mrb[0].mxu0
        %v675 = vadd.f32 %v497, %v674
        %v676 = vpop.f32.mrb[0].mxu0
        %677 = vmatprep.mubr.f32.mxu0 0.0
        %678 = vmatmul.mubr.f32.gmra.mrb[0].mxu0 %v540
        %v679 = vpop.f32.mrb[0].mxu0
        %v680 = vadd.f32 %v497, %v679
        %v681 = vpop.f32.mrb[0].mxu0
        %682 = vmatprep.mubr.f32.mxu0 0.0
        %683 = vmatmul.mubr.f32.gmra.mrb[0].mxu0 %v543
        %v684 = vpop.f32.mrb[0].mxu0
        %v685 = vadd.f32 %v497, %v684
        %v686 = vpop.f32.mrb[0].mxu0
        %687 = vmatprep.mubr.f32.mxu0 0.0
        %688 = vmatmul.mubr.f32.gmra.mrb[0].mxu0 %v546
        %v689 = vpop.f32.mrb[0].mxu0
        %v690 = vadd.f32 %v497, %v689
        %v691 = vpop.f32.mrb[0].mxu0
        %692 = vdwg.mxu0
        %v693 = vld [vmem:[%s446] sm:$0xff]
        %v694 = vld [vmem:[%s446 + $0x8] sm:$0xff]
        %v695 = vld [vmem:[%s446 + $0x10] sm:$0xff]
        %v696 = vld [vmem:[%s446 + $0x18] sm:$0xff]
        %v697 = vld [vmem:[%s446 + $0x20] sm:$0xff]
        %v698 = vld [vmem:[%s446 + $0x28] sm:$0xff]
        %v699 = vld [vmem:[%s446 + $0x30] sm:$0xff]
        %v700 = vld [vmem:[%s446 + $0x38] sm:$0xff]
        %v701 = vld [vmem:[%s446 + $0x40] sm:$0xff]
        %v702 = vld [vmem:[%s446 + $0x48] sm:$0xff]
        %v703 = vld [vmem:[%s446 + $0x50] sm:$0xff]
        %v704 = vld [vmem:[%s446 + $0x58] sm:$0xff]
        %v705 = vld [vmem:[%s446 + $0x60] sm:$0xff]
        %v706 = vld [vmem:[%s446 + $0x68] sm:$0xff]
        %v707 = vld [vmem:[%s446 + $0x70] sm:$0xff]
        %v708 = vld [vmem:[%s446 + $0x78] sm:$0xff]
        %710 = vset.pattern.permute.xlu0 0
        %711 = vperm.xlu0 %710, %v693
        %v712 = vpop.permute.xlu0 %711
        %715 = vset.pattern.permute.xlu0 0
        %716 = vperm.xlu0 %715, %v694
        %v717 = vpop.permute.xlu0 %716
        %720 = vset.pattern.permute.xlu0 0
        %721 = vperm.xlu0 %720, %v695
        %v722 = vpop.permute.xlu0 %721
        %725 = vset.pattern.permute.xlu0 0
        %726 = vperm.xlu0 %725, %v696
        %v727 = vpop.permute.xlu0 %726
        %730 = vset.pattern.permute.xlu0 0
        %731 = vperm.xlu0 %730, %v697
        %v732 = vpop.permute.xlu0 %731
        %735 = vset.pattern.permute.xlu0 0
        %736 = vperm.xlu0 %735, %v698
        %v737 = vpop.permute.xlu0 %736
        %740 = vset.pattern.permute.xlu0 0
        %741 = vperm.xlu0 %740, %v699
        %v742 = vpop.permute.xlu0 %741
        %745 = vset.pattern.permute.xlu0 0
        %746 = vperm.xlu0 %745, %v700
        %v747 = vpop.permute.xlu0 %746
        %750 = vset.pattern.permute.xlu0 0
        %751 = vperm.xlu0 %750, %v701
        %v752 = vpop.permute.xlu0 %751
        %755 = vset.pattern.permute.xlu0 0
        %756 = vperm.xlu0 %755, %v702
        %v757 = vpop.permute.xlu0 %756
        %760 = vset.pattern.permute.xlu0 0
        %761 = vperm.xlu0 %760, %v703
        %v762 = vpop.permute.xlu0 %761
        %765 = vset.pattern.permute.xlu0 0
        %766 = vperm.xlu0 %765, %v704
        %v767 = vpop.permute.xlu0 %766
        %770 = vset.pattern.permute.xlu0 0
        %771 = vperm.xlu0 %770, %v705
        %v772 = vpop.permute.xlu0 %771
        %775 = vset.pattern.permute.xlu0 0
        %776 = vperm.xlu0 %775, %v706
        %v777 = vpop.permute.xlu0 %776
        %780 = vset.pattern.permute.xlu0 0
        %781 = vperm.xlu0 %780, %v707
        %v782 = vpop.permute.xlu0 %781
        %785 = vset.pattern.permute.xlu0 0
        %786 = vperm.xlu0 %785, %v708
        %v787 = vpop.permute.xlu0 %786
        %v789 = vmul.f32 %v712, %v615
        %v790 = vmul.f32 %v717, %v620
        %v791 = vmul.f32 %v722, %v625
        %v792 = vmul.f32 %v727, %v630
        %v793 = vmul.f32 %v732, %v635
        %v794 = vmul.f32 %v737, %v640
        %v795 = vmul.f32 %v742, %v645
        %v796 = vmul.f32 %v747, %v650
        %v797 = vmul.f32 %v752, %v655
        %v798 = vmul.f32 %v757, %v660
        %v799 = vmul.f32 %v762, %v665
        %v800 = vmul.f32 %v767, %v670
        %v801 = vmul.f32 %v772, %v675
        %v802 = vmul.f32 %v777, %v680
        %v803 = vmul.f32 %v782, %v685
        %v804 = vmul.f32 %v787, %v690
        %v805 = vpack.c.bf16 %v790, %v789
        %v806 = vpack.c.bf16 %v792, %v791
        %v807 = vpack.c.bf16 %v794, %v793
        %v808 = vpack.c.bf16 %v796, %v795
        %v809 = vpack.c.bf16 %v798, %v797
        %v810 = vpack.c.bf16 %v800, %v799
        %v811 = vpack.c.bf16 %v802, %v801
        %v812 = vpack.c.bf16 %v804, %v803
        %v813 = vld [vmem:[#allocation2] sm:$0xff]
        %v814 = vld [vmem:[#allocation2 + $0x8] sm:$0xff]
        %v815 = vld [vmem:[#allocation2 + $0x10] sm:$0xff]
        %v816 = vld [vmem:[#allocation2 + $0x18] sm:$0xff]
        %v817 = vld [vmem:[#allocation2 + $0x20] sm:$0xff]
        %v818 = vld [vmem:[#allocation2 + $0x28] sm:$0xff]
        %v819 = vld [vmem:[#allocation2 + $0x30] sm:$0xff]
        %v820 = vld [vmem:[#allocation2 + $0x38] sm:$0xff]
        %v821 = vld [vmem:[%s389] sm:$0xf]
        %v822 = vld [vmem:[%s389 + $0x4] sm:$0xf]
        %v823 = vld [vmem:[%s389 + $0x8] sm:$0xf]
        %v824 = vld [vmem:[%s389 + $0xc] sm:$0xf]
        %v825 = vld [vmem:[%s389 + $0x10] sm:$0xf]
        %v826 = vld [vmem:[%s389 + $0x14] sm:$0xf]
        %v827 = vld [vmem:[%s389 + $0x18] sm:$0xf]
        %v828 = vld [vmem:[%s389 + $0x1c] sm:$0xf]
        %v837 = vunpack.c.l.b16 %v821
        %v838 = vunpack.c.l.b16 %v822
        %v839 = vunpack.c.l.b16 %v823
        %v840 = vunpack.c.l.b16 %v824
        %v841 = vunpack.c.l.b16 %v825
        %v842 = vunpack.c.l.b16 %v826
        %v843 = vunpack.c.l.b16 %v827
        %v844 = vunpack.c.l.b16 %v828
        %v845 = vpack.c.b16 %v838, %v837
        %v846 = vpack.c.b16 %v840, %v839
        %v847 = vpack.c.b16 %v842, %v841
        %v848 = vpack.c.b16 %v844, %v843
        %853 = vmatprep.subr.bf16.mxu0 0
        %854 = vmatpush1.bf16.msra.mxu0 %v805
        %855 = vmatprep.subr.bf16.mxu0 0
        %856 = vmatpush1.bf16.msra.mxu0 %v806
        %857 = vmatprep.subr.bf16.mxu0 0
        %858 = vmatpush1.bf16.msra.mxu0 %v807
        %859 = vmatprep.subr.bf16.mxu0 0
        %860 = vmatpush1.bf16.msra.mxu0 %v808
        %861 = vmatprep.subr.bf16.mxu0 0
        %862 = vmatpush1.bf16.msra.mxu0 %v809
        %863 = vmatprep.subr.bf16.mxu0 0
        %864 = vmatpush1.bf16.msra.mxu0 %v810
        %865 = vmatprep.subr.bf16.mxu0 0
        %866 = vmatpush1.bf16.msra.mxu0 %v811
        %867 = vmatprep.subr.bf16.mxu0 0
        %868 = vmatpush1.bf16.msra.mxu0 %v812
        %869 = vmatprep.subr.bf16.mxu0 0
        %870 = vmatpush1.bf16.msra.mxu0 0
        %871 = vmatprep.subr.bf16.mxu0 0
        %872 = vmatpush1.bf16.msra.mxu0 0
        %873 = vmatprep.subr.bf16.mxu0 0
        %874 = vmatpush1.bf16.msra.mxu0 0
        %875 = vmatprep.subr.bf16.mxu0 0
        %876 = vmatpush1.bf16.msra.mxu0 0
        %877 = vmatprep.subr.bf16.mxu0 0
        %878 = vmatpush1.bf16.msra.mxu0 0
        %879 = vmatprep.subr.bf16.mxu0 0
        %880 = vmatpush1.bf16.msra.mxu0 0
        %881 = vmatprep.subr.bf16.mxu0 0
        %882 = vmatpush1.bf16.msra.mxu0 0
        %883 = vmatprep.subr.bf16.mxu0 0
        %884 = vmatpush1.bf16.msra.mxu0 0
        %885 = vmatprep.mubr.bf16.mxu0 0
        %886 = vmatmul.mubr.bf16.gmra.mrb[0].mxu0 %v845
        %v887 = vpop.f32.mrb[0].mxu0
        %v888 = vadd.f32 0.0, %v887
        %v889 = vpop.f32.mrb[0].mxu0
        %v890 = vpop.f32.mrb[0].mxu0
        %v891 = vadd.f32 0.0, %v890
        %v892 = vpop.f32.mrb[0].mxu0
        %893 = vmatprep.mubr.bf16.mxu0 0
        %894 = vmatmul.mubr.bf16.gmra.mrb[0].mxu0 %v846
        %v895 = vpop.f32.mrb[0].mxu0
        %v896 = vadd.f32 0.0, %v895
        %v897 = vpop.f32.mrb[0].mxu0
        %v898 = vpop.f32.mrb[0].mxu0
        %v899 = vadd.f32 0.0, %v898
        %v900 = vpop.f32.mrb[0].mxu0
        %901 = vmatprep.mubr.bf16.mxu0 0
        %902 = vmatmul.mubr.bf16.gmra.mrb[0].mxu0 %v847
        %v903 = vpop.f32.mrb[0].mxu0
        %v904 = vadd.f32 0.0, %v903
        %v905 = vpop.f32.mrb[0].mxu0
        %v906 = vpop.f32.mrb[0].mxu0
        %v907 = vadd.f32 0.0, %v906
        %v908 = vpop.f32.mrb[0].mxu0
        %909 = vmatprep.mubr.bf16.mxu0 0
        %910 = vmatmul.mubr.bf16.gmra.mrb[0].mxu0 %v848
        %v911 = vpop.f32.mrb[0].mxu0
        %v912 = vadd.f32 0.0, %v911
        %v913 = vpop.f32.mrb[0].mxu0
        %v914 = vpop.f32.mrb[0].mxu0
        %v915 = vadd.f32 0.0, %v914
        %v916 = vpop.f32.mrb[0].mxu0
        %917 = vdwg.mxu0
        %v918 = vadd.f32 %v813, %v888
        %v919 = vadd.f32 %v814, %v891
        %v920 = vadd.f32 %v815, %v896
        %v921 = vadd.f32 %v816, %v899
        %v922 = vadd.f32 %v817, %v904
        %v923 = vadd.f32 %v818, %v907
        %v924 = vadd.f32 %v819, %v912
        %v925 = vadd.f32 %v820, %v915
        %vm926 = vcmask 261120
        %927 = vst.msk [vmem:[#allocation2] sm:$0xff] %vm926, %v918
        %928 = vst.msk [vmem:[#allocation2 + $0x8] sm:$0xff] %vm926, %v919
        %929 = vst.msk [vmem:[#allocation2 + $0x10] sm:$0xff] %vm926, %v920
        %930 = vst.msk [vmem:[#allocation2 + $0x18] sm:$0xff] %vm926, %v921
        %931 = vst.msk [vmem:[#allocation2 + $0x20] sm:$0xff] %vm926, %v922
        %932 = vst.msk [vmem:[#allocation2 + $0x28] sm:$0xff] %vm926, %v923
        %933 = vst.msk [vmem:[#allocation2 + $0x30] sm:$0xff] %vm926, %v924
        %934 = vst.msk [vmem:[#allocation2 + $0x38] sm:$0xff] %vm926, %v925
        %p935 = scmp.eq.s32.totalorder %s24, 1
        // Predicated region
        $region98: #{gcn_forward.2} parent=88 // pred_check
          %p936 = pneg %p935
        $region99: #{gcn_forward.2} parent=88 // pred_check_branch
          %938 = sbr.rel (%p936) target = $region101
        $region100: #{gcn_forward.2} parent=88 // pred_region
          %v939 = vld [vmem:[%s452] sm:$0xff]
          %v940 = vld [vmem:[%s452 + $0x8] sm:$0xff]
          %v941 = vld [vmem:[%s452 + $0x10] sm:$0xff]
          %v942 = vld [vmem:[%s452 + $0x18] sm:$0xff]
          %v943 = vld [vmem:[%s452 + $0x20] sm:$0xff]
          %v944 = vld [vmem:[%s452 + $0x28] sm:$0xff]
          %v945 = vld [vmem:[%s452 + $0x30] sm:$0xff]
          %v946 = vld [vmem:[%s452 + $0x38] sm:$0xff]
          %v947 = vld [vmem:[#allocation2] sm:$0xff]
          %v948 = vld [vmem:[#allocation2 + $0x8] sm:$0xff]
          %v949 = vld [vmem:[#allocation2 + $0x10] sm:$0xff]
          %v950 = vld [vmem:[#allocation2 + $0x18] sm:$0xff]
          %v951 = vld [vmem:[#allocation2 + $0x20] sm:$0xff]
          %v952 = vld [vmem:[#allocation2 + $0x28] sm:$0xff]
          %v953 = vld [vmem:[#allocation2 + $0x30] sm:$0xff]
          %v954 = vld [vmem:[#allocation2 + $0x38] sm:$0xff]
          %956 = vset.pattern.permute.xlu0 0
          %957 = vperm.xlu0 %956, %v939
          %v958 = vpop.permute.xlu0 %957
          %961 = vset.pattern.permute.xlu0 0
          %962 = vperm.xlu0 %961, %v940
          %v963 = vpop.permute.xlu0 %962
          %966 = vset.pattern.permute.xlu0 0
          %967 = vperm.xlu0 %966, %v941
          %v968 = vpop.permute.xlu0 %967
          %971 = vset.pattern.permute.xlu0 0
          %972 = vperm.xlu0 %971, %v942
          %v973 = vpop.permute.xlu0 %972
          %976 = vset.pattern.permute.xlu0 0
          %977 = vperm.xlu0 %976, %v943
          %v978 = vpop.permute.xlu0 %977
          %981 = vset.pattern.permute.xlu0 0
          %982 = vperm.xlu0 %981, %v944
          %v983 = vpop.permute.xlu0 %982
          %986 = vset.pattern.permute.xlu0 0
          %987 = vperm.xlu0 %986, %v945
          %v988 = vpop.permute.xlu0 %987
          %991 = vset.pattern.permute.xlu0 0
          %992 = vperm.xlu0 %991, %v946
          %v993 = vpop.permute.xlu0 %992
          %v995 = vmul.f32 %v958, %v947
          %v996 = vmul.f32 %v963, %v948
          %v997 = vmul.f32 %v968, %v949
          %v998 = vmul.f32 %v973, %v950
          %v999 = vmul.f32 %v978, %v951
          %v1000 = vmul.f32 %v983, %v952
          %v1001 = vmul.f32 %v988, %v953
          %v1002 = vmul.f32 %v993, %v954
          %v1003 = vld [vmem:[%s6] sm:$0x1]
          %v1005 = vlaneseq
          %v1006 = vshrl.u32 %v1005, 7
          %v1007 = vsub.s32 0, %v1006
          %v1008 = vrot.slane %v1003, %v1007
          %v1010 = vmul.f32 %v995, %v1008
          %v1011 = vmul.f32 %v996, %v1008
          %v1012 = vmul.f32 %v997, %v1008
          %v1013 = vmul.f32 %v998, %v1008
          %v1014 = vmul.f32 %v999, %v1008
          %v1015 = vmul.f32 %v1000, %v1008
          %v1016 = vmul.f32 %v1001, %v1008
          %v1017 = vmul.f32 %v1002, %v1008
          %v1018 = vld [vmem:[%s7] sm:$0x1]
          %v1020 = vlaneseq
          %v1021 = vshrl.u32 %v1020, 7
          %v1022 = vsub.s32 0, %v1021
          %v1023 = vrot.slane %v1018, %v1022
          %v1025 = vadd.f32 %v1010, %v1023
          %v1026 = vadd.f32 %v1011, %v1023
          %v1027 = vadd.f32 %v1012, %v1023
          %v1028 = vadd.f32 %v1013, %v1023
          %v1029 = vadd.f32 %v1014, %v1023
          %v1030 = vadd.f32 %v1015, %v1023
          %v1031 = vadd.f32 %v1016, %v1023
          %v1032 = vadd.f32 %v1017, %v1023
          %v1033 = vmax.f32 %v1025, 0.0
          %v1034 = vmax.f32 %v1026, 0.0
          %v1035 = vmax.f32 %v1027, 0.0
          %v1036 = vmax.f32 %v1028, 0.0
          %v1037 = vmax.f32 %v1029, 0.0
          %v1038 = vmax.f32 %v1030, 0.0
          %v1039 = vmax.f32 %v1031, 0.0
          %v1040 = vmax.f32 %v1032, 0.0
          %1041 = vst.msk [vmem:[%s458] sm:$0xff] %vm926, %v1033
          %1042 = vst.msk [vmem:[%s458 + $0x8] sm:$0xff] %vm926, %v1034
          %1043 = vst.msk [vmem:[%s458 + $0x10] sm:$0xff] %vm926, %v1035
          %1044 = vst.msk [vmem:[%s458 + $0x18] sm:$0xff] %vm926, %v1036
          %1045 = vst.msk [vmem:[%s458 + $0x20] sm:$0xff] %vm926, %v1037
          %1046 = vst.msk [vmem:[%s458 + $0x28] sm:$0xff] %vm926, %v1038
          %1047 = vst.msk [vmem:[%s458 + $0x30] sm:$0xff] %vm926, %v1039
          %1048 = vst.msk [vmem:[%s458 + $0x38] sm:$0xff] %vm926, %v1040
        $region101: #{gcn_forward.2} parent=88 // pred_fallthru
          _
        %s1049 = smul.u32 8, %s23
        %p1050 = scmp.lt.s32.totalorder %s1049, 31
        %s1051 = scalar_select %p1050, %s1049, 31
        %s1052 = smul.addr %s1051, 8
        %s1053 = scalar_lea.vmem %s8, %s1052
        // Predicated region
        $region102: #{gcn_forward.2} parent=88 // pred_check
          %p1054 = pneg %p239
        $region103: #{gcn_forward.2} parent=88 // pred_check_branch
          %1056 = sbr.rel (%p1054) target = $region105
        $region104: #{gcn_forward.2} parent=88 // pred_region
          %s1057 = smul.u32 8, %s23
        $region105: #{gcn_forward.2} parent=88 // pred_fallthru
          _
      $region89: #{gcn_forward.2} parent=5 // pred_fallthru
        _
      %p1058 = scmp.le.s32.totalorder 2, %s14
      // Predicated region
      $region106: #{gcn_forward.2} parent=5 // pred_check
        %p1059 = pneg %p1058
      $region107: #{gcn_forward.2} parent=5 // pred_check_branch
        %1061 = sbr.rel (%p1059) target = $region109
      $region108: #{gcn_forward.2} parent=5 // pred_region
        %s1062 = ssub.s32 %s14, 2
        // Predicated region
        $region110: #{gcn_forward.2} parent=108 // pred_check
          %p1063 = pneg %p245
        $region111: #{gcn_forward.2} parent=108 // pred_check_branch
          %1065 = sbr.rel (%p1063) target = $region113
        $region112: #{gcn_forward.2} parent=108 // pred_region
          %s1066 = smul.u32 8, %s25
          %p1067 = scmp.lt.s32.totalorder %s1066, 31
          %s1068 = scalar_select %p1067, %s1066, 31
          %s1069 = smul.addr %s1068, 8
          %s1070 = scalar_lea.vmem %s8, %s1069
        $region113: #{gcn_forward.2} parent=108 // pred_fallthru
          _
      $region109: #{gcn_forward.2} parent=5 // pred_fallthru
        _
    $region6: #{gcn_forward.2} parent=1 // loop_footer
      %s18 = sadd.s32 1, %s14
    $region7: #{gcn_forward.2} parent=1 // loop_footer_branch
      %13 = sbr.rel target = $region3
    $region8: #{gcn_forward.2} parent=1 // loop_exit
      _

</llo_original>
